<compile_context>
chip_gen: v5e
topology: v5e:2x2
jax: 0.10.0
libtpu: 0.0.40
codegen_flags: <defaults>
</compile_context>

<pallas_src>
import jax
import jax.numpy as jnp
from jax.experimental import pallas as pl
from jax.experimental.pallas import tpu as pltpu

BN_EPS = 1e-5      # nn.BatchNorm1d default eps
NORM_EPS = 1e-12   # F.normalize default eps


def _pick_block_rows(n):
    """Largest row tile in {512,...,8} dividing n; else a single full-batch tile."""
    for cand in (512, 256, 128, 64, 32, 16, 8):
        if n % cand == 0:
            return cand
    return n


# ---------------- phase 1: Linear1 + per-tile batch-stat partials ----------------

def _phase1_kernel(x_ref, w1_ref, b1_ref, h_ref, stats_ref):
    x = x_ref[...].astype(jnp.bfloat16)                      # bf16 feed for MXU
    h = jnp.dot(x, w1_ref[...], preferred_element_type=jnp.float32)
    h = h + b1_ref[...]                                      # (bn, Dh) f32
    h_ref[...] = h.astype(h_ref.dtype)                       # stash bf16 h for phase 2
    s = jnp.sum(h, axis=0, keepdims=True)                    # (1, Dh)
    ss = jnp.sum(h * h, axis=0, keepdims=True)               # (1, Dh)  (one-pass var)
    stats_ref[...] = jnp.concatenate([s, ss], axis=0).reshape(1, 2, -1)


# -------- phase 2: fused BN affine + ReLU + Linear2 + L2 normalize ---------------

def _phase2_kernel(h_ref, scale_ref, shift_ref, w2_ref, out_ref):
    h = h_ref[...].astype(jnp.float32)
    a = jnp.maximum(h * scale_ref[...] + shift_ref[...], 0.0)      # fused scale/shift
    y = jnp.dot(a.astype(jnp.bfloat16), w2_ref[...],
                preferred_element_type=jnp.float32)
    sumsq = jnp.sum(y * y, axis=1, keepdims=True)
    inv_norm = jax.lax.rsqrt(jnp.maximum(sumsq, NORM_EPS * NORM_EPS))  # == 1/max(||y||,eps)
    out_ref[...] = (y * inv_norm).astype(out_ref.dtype)


def prepare_projection_params(w1, b1, gamma, beta, w2):
    """One-time conversion of torch-layout params to kernel layout (transposed, bf16)."""
    return dict(
        w1_t=jnp.asarray(w1, jnp.float32).T.astype(jnp.bfloat16),   # (Din, Dh)
        b1=jnp.asarray(b1, jnp.float32).reshape(1, -1),             # (1, Dh)
        gamma=jnp.asarray(gamma, jnp.float32),                      # (Dh,)
        beta=jnp.asarray(beta, jnp.float32),                        # (Dh,)
        w2_t=jnp.asarray(w2, jnp.float32).T.astype(jnp.bfloat16),   # (Dh, Dout)
    )


@jax.jit
def projection_forward(x, params):
    w1_t, b1 = params["w1_t"], params["b1"]
    gamma, beta, w2_t = params["gamma"], params["beta"], params["w2_t"]

    n, d_in = x.shape
    d_hid = w1_t.shape[1]
    d_out = w2_t.shape[1]
    bn = _pick_block_rows(n)
    g = n // bn

    cparams = pltpu.CompilerParams(
        dimension_semantics=("parallel",),
        vmem_limit_bytes=48 * 1024 * 1024,
    )

    # ---- phase 1: h (bf16) + per-tile [sum; sumsq] partials ----
    h_bf16, stats = pl.pallas_call(
        _phase1_kernel,
        grid=(g,),
        in_specs=[
            pl.BlockSpec((bn, d_in), lambda i: (i, 0)),        # x tile (pipelined)
            pl.BlockSpec((d_in, d_hid), lambda i: (0, 0)),     # w1 resident in VMEM
            pl.BlockSpec((1, d_hid), lambda i: (0, 0)),        # b1 resident
        ],
        out_specs=[
            pl.BlockSpec((bn, d_hid), lambda i: (i, 0)),       # h tile
            pl.BlockSpec((1, 2, d_hid), lambda i: (i, 0, 0)),  # per-tile partials
        ],
        out_shape=[
            jax.ShapeDtypeStruct((n, d_hid), jnp.bfloat16),
            jax.ShapeDtypeStruct((g, 2, d_hid), jnp.float32),
        ],
        compiler_params=cparams,
    )(x, w1_t, b1)

    # ---- tiny (Dh,)-sized glue: reduce partials, fold BN into one scale/shift ----
    totals = jnp.sum(stats, axis=0)                            # (2, Dh)
    mean = totals[0] / n
    var = jnp.maximum(totals[1] / n - mean * mean, 0.0)        # biased (training) var
    inv_std = jax.lax.rsqrt(var + BN_EPS)
    scale = (gamma * inv_std).reshape(1, -1)
    shift = (beta - mean * gamma * inv_std).reshape(1, -1)

    # ---- phase 2: apply BN affine + ReLU + matmul2 + normalize ----
    out = pl.pallas_call(
        _phase2_kernel,
        grid=(g,),
        in_specs=[
            pl.BlockSpec((bn, d_hid), lambda i: (i, 0)),       # h tile (pipelined)
            pl.BlockSpec((1, d_hid), lambda i: (0, 0)),        # scale resident
            pl.BlockSpec((1, d_hid), lambda i: (0, 0)),        # shift resident
            pl.BlockSpec((d_hid, d_out), lambda i: (0, 0)),    # w2 resident
        ],
        out_specs=pl.BlockSpec((bn, d_out), lambda i: (i, 0)),
        out_shape=jax.ShapeDtypeStruct((n, d_out), jnp.float32),
        compiler_params=cparams,
    )(h_bf16, scale, shift, w2_t)
    return out


def projection_reference(x, w1, b1, gamma, beta, w2):
    """Pure-JAX f32 reference matching PyTorch training-mode forward."""
    h = x @ w1.T + b1
    mean = h.mean(axis=0, keepdims=True)
    var = ((h - mean) ** 2).mean(axis=0, keepdims=True)
    h = (h - mean) / jnp.sqrt(var + BN_EPS) * gamma + beta
    a = jnp.maximum(h, 0.0)
    y = a @ w2.T
    norm = jnp.sqrt(jnp.sum(y * y, axis=1, keepdims=True))
    return y / jnp.maximum(norm, NORM_EPS)


if __name__ == "__main__":
    # Small shapes consistent with the module (2048/2048/128 scaled down),
    # lane-aligned (multiples of 128); N=384 gives a 3-step batch grid (tile=128).
    N, D_IN, D_HID, D_OUT = 384, 256, 256, 128

    key = jax.random.PRNGKey(0)
    kx, kw1, kb1, kw2 = jax.random.split(key, 4)

    x = jax.random.normal(kx, (N, D_IN), dtype=jnp.float32)
    w1 = jax.random.uniform(kw1, (D_HID, D_IN), minval=-1.0, maxval=1.0) / jnp.sqrt(D_IN)
    b1 = jax.random.uniform(kb1, (D_HID,), minval=-1.0, maxval=1.0) / jnp.sqrt(D_IN)
    gamma = jnp.ones((D_HID,), jnp.float32)    # BatchNorm1d weight init
    beta = jnp.zeros((D_HID,), jnp.float32)    # BatchNorm1d bias init
    w2 = jax.random.uniform(kw2, (D_OUT, D_HID), minval=-1.0, maxval=1.0) / jnp.sqrt(D_HID)

    params = prepare_projection_params(w1, b1, gamma, beta, w2)  # outside hot path
    out = jax.block_until_ready(projection_forward(x, params))

    ref = projection_reference(x, w1, b1, gamma, beta, w2)
    assert out.shape == (N, D_OUT)
    # bf16 MXU inputs with f32 accumulation: compare loosely to the f32 reference.
    assert jnp.allclose(out, ref, atol=2e-2, rtol=2e-2), float(jnp.max(jnp.abs(out - ref)))
    # Rows must be unit-norm (exact up to f32 rounding in the kernel epilogue).
    assert jnp.allclose(jnp.linalg.norm(out, axis=1), 1.0, atol=1e-3)

    print("KERNEL_OK")
</pallas_src>

<mosaic_0001>
module attributes {stable_mosaic.version = 11 : i64} {
  func.func @_phase1_kernel(%arg0: i32, %arg1: memref<128x256xf32, #tpu.memory_space<vmem>>, %arg2: memref<256x256xbf16, #tpu.memory_space<vmem>>, %arg3: memref<1x256xf32, #tpu.memory_space<vmem>>, %arg4: memref<128x256xbf16, #tpu.memory_space<vmem>>, %arg5: memref<1x2x256xf32, #tpu.memory_space<vmem>>) attributes {dimension_semantics = [#tpu.dimension_semantics<parallel>], iteration_bounds = array<i64: 3>, scalar_prefetch = 0 : i64, scratch_operands = 0 : i64, tpu.core_type = #tpu.core_type<tc>, window_params = [{transform_indices = @transform_0, window_bounds = array<i64: 128, 256>}, {pipeline_mode = #tpu.pipeline_mode<synchronous>, transform_indices = @transform_1, window_bounds = array<i64: 256, 256>}, {pipeline_mode = #tpu.pipeline_mode<synchronous>, transform_indices = @transform_2, window_bounds = array<i64: 1, 256>}, {transform_indices = @transform_3, window_bounds = array<i64: 128, 256>}, {transform_indices = @transform_4, window_bounds = array<i64: 1, 2, 256>}]} {
    %c0 = arith.constant 0 : index
    %c0_0 = arith.constant 0 : index
    %0 = vector.load %arg1[%c0, %c0_0] : memref<128x256xf32, #tpu.memory_space<vmem>>, vector<128x256xf32>
    %1 = arith.truncf %0 : vector<128x256xf32> to vector<128x256xbf16>
    %c0_1 = arith.constant 0 : index
    %c0_2 = arith.constant 0 : index
    %2 = vector.load %arg2[%c0_1, %c0_2] : memref<256x256xbf16, #tpu.memory_space<vmem>>, vector<256x256xbf16>
    %cst = arith.constant dense<0.000000e+00> : vector<128x256xf32>
    %3 = tpu.matmul %1, %2, %cst {dimension_numbers = #tpu.dot_dimension_numbers<[1], [0], [0], [1], [0, 0, 1, 1], [], []>} : vector<128x256xbf16>, vector<256x256xbf16>, vector<128x256xf32> -> vector<128x256xf32>
    %c0_3 = arith.constant 0 : index
    %c0_4 = arith.constant 0 : index
    %4 = vector.load %arg3[%c0_3, %c0_4] : memref<1x256xf32, #tpu.memory_space<vmem>>, vector<1x256xf32>
    %5 = vector.broadcast %4 : vector<1x256xf32> to vector<128x256xf32>
    %6 = arith.addf %3, %5 : vector<128x256xf32>
    %7 = arith.truncf %6 : vector<128x256xf32> to vector<128x256xbf16>
    %c0_5 = arith.constant 0 : index
    %c0_6 = arith.constant 0 : index
    %8 = vector.load %arg4[%c0_5, %c0_6] : memref<128x256xbf16, #tpu.memory_space<vmem>>, vector<128x256xbf16>
    tpu.vector_store %arg4[%c0_5, %c0_6], %7 {strides = array<i32>} : memref<128x256xbf16, #tpu.memory_space<vmem>>, vector<128x256xbf16>,
    %cst_7 = arith.constant dense<0.000000e+00> : vector<256xf32>
    %9 = vector.multi_reduction <add>, %6, %cst_7 [0] : vector<128x256xf32> to vector<256xf32>
    %10 = vector.shape_cast %9 : vector<256xf32> to vector<1x256xf32>
    %11 = arith.mulf %6, %6 : vector<128x256xf32>
    %cst_8 = arith.constant dense<0.000000e+00> : vector<256xf32>
    %12 = vector.multi_reduction <add>, %11, %cst_8 [0] : vector<128x256xf32> to vector<256xf32>
    %13 = vector.shape_cast %12 : vector<256xf32> to vector<1x256xf32>
    %14 = tpu.concatenate %10, %13 in 0 : vector<1x256xf32>, vector<1x256xf32> -> vector<2x256xf32>
    %15 = vector.shape_cast %14 : vector<2x256xf32> to vector<1x2x256xf32>
    %c0_9 = arith.constant 0 : index
    %c0_10 = arith.constant 0 : index
    %c0_11 = arith.constant 0 : index
    %16 = vector.load %arg5[%c0_9, %c0_10, %c0_11] : memref<1x2x256xf32, #tpu.memory_space<vmem>>, vector<1x2x256xf32>
    tpu.vector_store %arg5[%c0_9, %c0_10, %c0_11], %15 {strides = array<i32>} : memref<1x2x256xf32, #tpu.memory_space<vmem>>, vector<1x2x256xf32>,
    return
  }
  func.func @transform_0(%arg0: i32) -> (i32, i32) {
    %c0_i32 = arith.constant 0 : i32
    %c0_i32_0 = arith.constant 0 : i32
    return %arg0, %c0_i32 : i32, i32
  }
  func.func @transform_1(%arg0: i32) -> (i32, i32) {
    %c0_i32 = arith.constant 0 : i32
    %c0_i32_0 = arith.constant 0 : i32
    %c0_i32_1 = arith.constant 0 : i32
    return %c0_i32, %c0_i32_0 : i32, i32
  }
  func.func @transform_2(%arg0: i32) -> (i32, i32) {
    %c0_i32 = arith.constant 0 : i32
    %c0_i32_0 = arith.constant 0 : i32
    %c0_i32_1 = arith.constant 0 : i32
    return %c0_i32, %c0_i32_0 : i32, i32
  }
  func.func @transform_3(%arg0: i32) -> (i32, i32) {
    %c0_i32 = arith.constant 0 : i32
    %c0_i32_0 = arith.constant 0 : i32
    return %arg0, %c0_i32 : i32, i32
  }
  func.func @transform_4(%arg0: i32) -> (i32, i32, i32) {
    %c0_i32 = arith.constant 0 : i32
    %c0_i32_0 = arith.constant 0 : i32
    %c0_i32_1 = arith.constant 0 : i32
    return %arg0, %c0_i32, %c0_i32_0 : i32, i32, i32
  }
}

module attributes {stable_mosaic.version = 11 : i64} {
  func.func @_phase2_kernel(%arg0: i32, %arg1: memref<128x256xbf16, #tpu.memory_space<vmem>>, %arg2: memref<1x256xf32, #tpu.memory_space<vmem>>, %arg3: memref<1x256xf32, #tpu.memory_space<vmem>>, %arg4: memref<256x128xbf16, #tpu.memory_space<vmem>>, %arg5: memref<128x128xf32, #tpu.memory_space<vmem>>) attributes {dimension_semantics = [#tpu.dimension_semantics<parallel>], iteration_bounds = array<i64: 3>, scalar_prefetch = 0 : i64, scratch_operands = 0 : i64, tpu.core_type = #tpu.core_type<tc>, window_params = [{transform_indices = @transform_0, window_bounds = array<i64: 128, 256>}, {pipeline_mode = #tpu.pipeline_mode<synchronous>, transform_indices = @transform_1, window_bounds = array<i64: 1, 256>}, {pipeline_mode = #tpu.pipeline_mode<synchronous>, transform_indices = @transform_2, window_bounds = array<i64: 1, 256>}, {pipeline_mode = #tpu.pipeline_mode<synchronous>, transform_indices = @transform_3, window_bounds = array<i64: 256, 128>}, {transform_indices = @transform_4, window_bounds = array<i64: 128, 128>}]} {
    %c0 = arith.constant 0 : index
    %c0_0 = arith.constant 0 : index
    %0 = vector.load %arg1[%c0, %c0_0] : memref<128x256xbf16, #tpu.memory_space<vmem>>, vector<128x256xbf16>
    %1 = arith.extf %0 : vector<128x256xbf16> to vector<128x256xf32>
    %c0_1 = arith.constant 0 : index
    %c0_2 = arith.constant 0 : index
    %2 = vector.load %arg2[%c0_1, %c0_2] : memref<1x256xf32, #tpu.memory_space<vmem>>, vector<1x256xf32>
    %3 = vector.broadcast %2 : vector<1x256xf32> to vector<128x256xf32>
    %4 = arith.mulf %1, %3 : vector<128x256xf32>
    %c0_3 = arith.constant 0 : index
    %c0_4 = arith.constant 0 : index
    %5 = vector.load %arg3[%c0_3, %c0_4] : memref<1x256xf32, #tpu.memory_space<vmem>>, vector<1x256xf32>
    %6 = vector.broadcast %5 : vector<1x256xf32> to vector<128x256xf32>
    %7 = arith.addf %4, %6 : vector<128x256xf32>
    %cst = arith.constant 0.000000e+00 : f32
    %8 = vector.broadcast %cst : f32 to vector<128x256xf32>
    %9 = arith.maximumf %7, %8 : vector<128x256xf32>
    %10 = arith.truncf %9 : vector<128x256xf32> to vector<128x256xbf16>
    %c0_5 = arith.constant 0 : index
    %c0_6 = arith.constant 0 : index
    %11 = vector.load %arg4[%c0_5, %c0_6] : memref<256x128xbf16, #tpu.memory_space<vmem>>, vector<256x128xbf16>
    %cst_7 = arith.constant dense<0.000000e+00> : vector<128x128xf32>
    %12 = tpu.matmul %10, %11, %cst_7 {dimension_numbers = #tpu.dot_dimension_numbers<[1], [0], [0], [1], [0, 0, 1, 1], [], []>} : vector<128x256xbf16>, vector<256x128xbf16>, vector<128x128xf32> -> vector<128x128xf32>
    %13 = arith.mulf %12, %12 : vector<128x128xf32>
    %cst_8 = arith.constant dense<0.000000e+00> : vector<128xf32>
    %14 = vector.multi_reduction <add>, %13, %cst_8 [1] : vector<128x128xf32> to vector<128xf32>
    %15 = vector.shape_cast %14 : vector<128xf32> to vector<128x1xf32>
    %cst_9 = arith.constant 1.000000e-24 : f32
    %16 = vector.broadcast %cst_9 : f32 to vector<128x1xf32>
    %17 = arith.maximumf %15, %16 : vector<128x1xf32>
    %18 = math.rsqrt %17 : vector<128x1xf32>
    %19 = vector.broadcast %18 : vector<128x1xf32> to vector<128x128xf32>
    %20 = arith.mulf %12, %19 : vector<128x128xf32>
    %c0_10 = arith.constant 0 : index
    %c0_11 = arith.constant 0 : index
    %21 = vector.load %arg5[%c0_10, %c0_11] : memref<128x128xf32, #tpu.memory_space<vmem>>, vector<128x128xf32>
    tpu.vector_store %arg5[%c0_10, %c0_11], %20 {strides = array<i32>} : memref<128x128xf32, #tpu.memory_space<vmem>>, vector<128x128xf32>,
    return
  }
  func.func @transform_0(%arg0: i32) -> (i32, i32) {
    %c0_i32 = arith.constant 0 : i32
    %c0_i32_0 = arith.constant 0 : i32
    return %arg0, %c0_i32 : i32, i32
  }
  func.func @transform_1(%arg0: i32) -> (i32, i32) {
    %c0_i32 = arith.constant 0 : i32
    %c0_i32_0 = arith.constant 0 : i32
    %c0_i32_1 = arith.constant 0 : i32
    return %c0_i32, %c0_i32_0 : i32, i32
  }
  func.func @transform_2(%arg0: i32) -> (i32, i32) {
    %c0_i32 = arith.constant 0 : i32
    %c0_i32_0 = arith.constant 0 : i32
    %c0_i32_1 = arith.constant 0 : i32
    return %c0_i32, %c0_i32_0 : i32, i32
  }
  func.func @transform_3(%arg0: i32) -> (i32, i32) {
    %c0_i32 = arith.constant 0 : i32
    %c0_i32_0 = arith.constant 0 : i32
    %c0_i32_1 = arith.constant 0 : i32
    return %c0_i32, %c0_i32_0 : i32, i32
  }
  func.func @transform_4(%arg0: i32) -> (i32, i32) {
    %c0_i32 = arith.constant 0 : i32
    %c0_i32_0 = arith.constant 0 : i32
    return %arg0, %c0_i32 : i32, i32
  }
}

</mosaic_0001>

<llo_original>
// kernel: projection_forward.2
$region0: #{projection_forward.2}
  #allocation0 [shape = 'u32[]', space=smem, size = 0x4, offset = 0x4, fixed_abs, tag = 'smem constant byte address 0x4 - core index']
  #allocation1 [shape = 'u32[72,128]{1,0:T(1,128)}', space=vmem, size = 0x9000, scoped, tag = 'internal scratch']
  %s0 = inlined_call_operand.hbm [shape: f32[384,256], index: 0, kind: input, shape index: {}]
  %s1 = inlined_call_operand.hbm [shape: bf16[256,256], index: 1, kind: input, shape index: {}]
  %s2 = inlined_call_operand.hbm [shape: f32[1,256], index: 2, kind: input, shape index: {}]
  %s3 = inlined_call_operand.vmem [shape: bf16[384,256], index: 3, kind: output, shape index: {0}]
  %s4 = inlined_call_operand.vmem [shape: f32[3,2,256], index: 4, kind: output, shape index: {1}]
  %5 = xla_tuple %s3, %s4
  %s6 = sld [smem:[#allocation0]]
  $region65: #{projection_forward.2} parent=0
    _
  %s8 = ssub.s32 1, %s6
  %s9 = scalar_select 0, %s8, %s6
  $region1: #{projection_forward.2} parent=0
    #allocation2 [shape = 'u8[262144]{0}', space=vmem, size = 0x40000, scoped, tag = 'input window, operand 0']
    #allocation3 [shape = 's32[2]{0}', space=sflag, size = 0x8, scoped, tag = 'scoped memory for projection_forward.2']
    #allocation4 [shape = 'u8[131072]{0}', space=vmem, size = 0x20000, scoped, tag = 'input window, operand 1, single buffered']
    #allocation5 [shape = 's32[1]{0}', space=sflag, size = 0x4, scoped, tag = 'scoped memory for projection_forward.2']
    #allocation6 [shape = 'u8[1024]{0}', space=vmem, size = 0x400, scoped, tag = 'input window, operand 2, single buffered']
    %10 = vsyncpa [#allocation3], 0
    %s11 = scalar_lea.sflag [#allocation3], 1
    %12 = vsyncpa %s11, 0
    %13 = vsyncpa [#allocation5], 0
    loop: start=0, step=1, limit=5
    $region2: #{projection_forward.2} parent=1 // loop_pre_header
      _
    $region3: #{projection_forward.2} parent=1 // loop_header
      %s15 = sphi 0, %s19
      %p16 = scmp.ge.s32.totalorder %s15, 5
      %s25 = sphi 0, %s27
      %s28 = sphi 0, %s25
      %s29 = sphi 0, %s28
      %s45 = sphi 0, %s29
      %s49 = sphi 0, %s49
      %s51 = sphi 0, %s49
      %s52 = sphi 0, %s51
      %s66 = sphi 0, %s52
      %s70 = sphi 0, %s70
      %s72 = sphi 0, %s70
      %s73 = sphi 0, %s72
      %s87 = sphi 0, %s73
      %s93 = sphi 0, %s95
      %s96 = sphi 0, %s93
      %s97 = sphi 0, %s96
      %s113 = sphi 0, %s97
      %s119 = sphi 0, %s121
      %s122 = sphi 0, %s119
      %s123 = sphi 0, %s122
      %s139 = sphi 0, %s123
    $region4: #{projection_forward.2} parent=1 // loop_header_branch
      %18 = sbr.rel (%p16) target = $region8
    $region5: #{projection_forward.2} parent=1 // loop_body
      %s20 = ssub.s32 %s15, 1
      %s21 = ssub.s32 %s15, 2
      %s22 = sadd.s32 %s15, 1
      %s23 = ssub.s32 %s15, %s22
      %p24 = scmp.eq.s32.totalorder %s23, 0
      %s26 = sadd.s32 %s25, 1
      %s27 = scalar_select %p24, %s25, %s26
      %p30 = pneg %p24
      %p31 = scmp.eq.s32.totalorder %s15, 2
      %p32 = por %p30, %p31
      %p33 = scmp.ne.s32.totalorder %s25, %s28
      %p34 = scmp.eq.s32.totalorder %s15, 0
      %p35 = por %p33, %p34
      %p36 = scmp.ne.s32.totalorder %s25, %s28
      %p37 = scmp.eq.s32.totalorder %s20, 2
      %p38 = por %p36, %p37
      %p39 = scmp.ne.s32.totalorder %s28, %s29
      %p40 = scmp.eq.s32.totalorder %s20, 0
      %p41 = por %p39, %p40
      %p42 = scmp.ne.s32.totalorder %s28, %s29
      %p43 = scmp.eq.s32.totalorder %s21, 2
      %p44 = por %p42, %p43
      %p46 = scmp.ne.s32.totalorder %s29, %s45
      %p47 = scmp.eq.s32.totalorder %s21, 0
      %p48 = por %p46, %p47
      %s50 = sadd.s32 %s49, 1
      %p53 = scmp.eq.s32.totalorder %s15, 2
      %p54 = scmp.ne.s32.totalorder %s49, %s51
      %p55 = scmp.eq.s32.totalorder %s15, 0
      %p56 = por %p54, %p55
      %p57 = scmp.ne.s32.totalorder %s49, %s51
      %p58 = scmp.eq.s32.totalorder %s20, 2
      %p59 = por %p57, %p58
      %p60 = scmp.ne.s32.totalorder %s51, %s52
      %p61 = scmp.eq.s32.totalorder %s20, 0
      %p62 = por %p60, %p61
      %p63 = scmp.ne.s32.totalorder %s51, %s52
      %p64 = scmp.eq.s32.totalorder %s21, 2
      %p65 = por %p63, %p64
      %p67 = scmp.ne.s32.totalorder %s52, %s66
      %p68 = scmp.eq.s32.totalorder %s21, 0
      %p69 = por %p67, %p68
      %s71 = sadd.s32 %s70, 1
      %p74 = scmp.eq.s32.totalorder %s15, 2
      %p75 = scmp.ne.s32.totalorder %s70, %s72
      %p76 = scmp.eq.s32.totalorder %s15, 0
      %p77 = por %p75, %p76
      %p78 = scmp.ne.s32.totalorder %s70, %s72
      %p79 = scmp.eq.s32.totalorder %s20, 2
      %p80 = por %p78, %p79
      %p81 = scmp.ne.s32.totalorder %s72, %s73
      %p82 = scmp.eq.s32.totalorder %s20, 0
      %p83 = por %p81, %p82
      %p84 = scmp.ne.s32.totalorder %s72, %s73
      %p85 = scmp.eq.s32.totalorder %s21, 2
      %p86 = por %p84, %p85
      %p88 = scmp.ne.s32.totalorder %s73, %s87
      %p89 = scmp.eq.s32.totalorder %s21, 0
      %p90 = por %p88, %p89
      %s91 = ssub.s32 %s15, %s22
      %p92 = scmp.eq.s32.totalorder %s91, 0
      %s94 = sadd.s32 %s93, 1
      %s95 = scalar_select %p92, %s93, %s94
      %p98 = pneg %p92
      %p99 = scmp.eq.s32.totalorder %s15, 2
      %p100 = por %p98, %p99
      %p101 = scmp.ne.s32.totalorder %s93, %s96
      %p102 = scmp.eq.s32.totalorder %s15, 0
      %p103 = por %p101, %p102
      %p104 = scmp.ne.s32.totalorder %s93, %s96
      %p105 = scmp.eq.s32.totalorder %s20, 2
      %p106 = por %p104, %p105
      %p107 = scmp.ne.s32.totalorder %s96, %s97
      %p108 = scmp.eq.s32.totalorder %s20, 0
      %p109 = por %p107, %p108
      %p110 = scmp.ne.s32.totalorder %s96, %s97
      %p111 = scmp.eq.s32.totalorder %s21, 2
      %p112 = por %p110, %p111
      %p114 = scmp.ne.s32.totalorder %s97, %s113
      %p115 = scmp.eq.s32.totalorder %s21, 0
      %p116 = por %p114, %p115
      %s117 = ssub.s32 %s15, %s22
      %p118 = scmp.eq.s32.totalorder %s117, 0
      %s120 = sadd.s32 %s119, 1
      %s121 = scalar_select %p118, %s119, %s120
      %p124 = pneg %p118
      %p125 = scmp.eq.s32.totalorder %s15, 2
      %p126 = por %p124, %p125
      %p127 = scmp.ne.s32.totalorder %s119, %s122
      %p128 = scmp.eq.s32.totalorder %s15, 0
      %p129 = por %p127, %p128
      %p130 = scmp.ne.s32.totalorder %s119, %s122
      %p131 = scmp.eq.s32.totalorder %s20, 2
      %p132 = por %p130, %p131
      %p133 = scmp.ne.s32.totalorder %s122, %s123
      %p134 = scmp.eq.s32.totalorder %s20, 0
      %p135 = por %p133, %p134
      %p136 = scmp.ne.s32.totalorder %s122, %s123
      %p137 = scmp.eq.s32.totalorder %s21, 2
      %p138 = por %p136, %p137
      %p140 = scmp.ne.s32.totalorder %s123, %s139
      %p141 = scmp.eq.s32.totalorder %s21, 0
      %p142 = por %p140, %p141
      %p143 = scmp.le.s32.totalorder 1, %s15
      %p144 = scmp.lt.s32.totalorder %s15, 4
      %p145 = pnand %p143, %p144
      %p146 = pneg %p145
      // Predicated region
      $region9: #{projection_forward.2} parent=5 // pred_check
        _
      $region10: #{projection_forward.2} parent=5 // pred_check_branch
        %148 = sbr.rel (%p145) target = $region12
      $region11: #{projection_forward.2} parent=5 // pred_region
        %s149 = ssub.s32 %s15, 1
        // Predicated region
        $region13: #{projection_forward.2} parent=11 // pred_check
          %p150 = pneg %p62
        $region14: #{projection_forward.2} parent=11 // pred_check_branch
          %152 = sbr.rel (%p150) target = $region16
        $region15: #{projection_forward.2} parent=11 // pred_region
          %154 = vsyncadd [#allocation5], 0
          %s155 = sshll.u32 %s1, 4
          %s156 = int_to_ptr.hbm [resolvable:$true] %s155
          %s157 = sshll.u32 [#allocation4], 4
          %s158 = int_to_ptr.vmem [resolvable:$true] %s157
          %163 = dma.hbm_to_vmem [thread:$0]  %s156, 4096, %s158, [#allocation5], 128, 128, 8
        $region16: #{projection_forward.2} parent=11 // pred_fallthru
          _
        // Predicated region
        $region17: #{projection_forward.2} parent=11 // pred_check
          %p164 = pneg %p83
        $region18: #{projection_forward.2} parent=11 // pred_check_branch
          %166 = sbr.rel (%p164) target = $region20
        $region19: #{projection_forward.2} parent=11 // pred_region
          %168 = vsyncadd [#allocation5], 0
          %s170 = sshll.u32 %s2, 4
          %s171 = int_to_ptr.hbm [resolvable:$true] %s170
          %s172 = sshll.u32 [#allocation6], 4
          %s173 = int_to_ptr.vmem [resolvable:$true] %s172
          %175 = dma.hbm_to_vmem [thread:$0]  %s171, 32, %s173, [#allocation5]
        $region20: #{projection_forward.2} parent=11 // pred_fallthru
          _
      $region12: #{projection_forward.2} parent=5 // pred_fallthru
        _
      %p176 = scmp.lt.s32.totalorder %s15, 3
      // Predicated region
      $region21: #{projection_forward.2} parent=5 // pred_check
        %p177 = pneg %p176
      $region22: #{projection_forward.2} parent=5 // pred_check_branch
        %179 = sbr.rel (%p177) target = $region24
      $region23: #{projection_forward.2} parent=5 // pred_region
        // Predicated region
        $region25: #{projection_forward.2} parent=23 // pred_check
          %p180 = pneg %p35
        $region26: #{projection_forward.2} parent=23 // pred_check_branch
          %182 = sbr.rel (%p180) target = $region28
        $region27: #{projection_forward.2} parent=23 // pred_region
          %s183 = sand.u32 %s25, 1
          %s184 = scalar_lea.sflag [#allocation3], %s183
          %s185 = sand.u32 %s25, 1
          %s186 = smul.addr %s185, 256
          %s187 = scalar_lea.vmem [#allocation2], %s186
          %s188 = smul.u32 16, %s15
          %190 = vsyncadd %s184, 0
          %s191 = smul.addr %s188, 2
          %s192 = smul.addr %s191, 8
          %s193 = scalar_lea.hbm %s0, %s192
          %s194 = sshll.u32 %s193, 4
          %s195 = int_to_ptr.hbm [resolvable:$true] %s194
          %s196 = sshll.u32 %s187, 4
          %s197 = int_to_ptr.vmem [resolvable:$true] %s196
          %202 = dma.hbm_to_vmem [thread:$0]  %s195, 4096, %s197, %s184, 256, 256, 16
        $region28: #{projection_forward.2} parent=23 // pred_fallthru
          _
      $region24: #{projection_forward.2} parent=5 // pred_fallthru
        _
      %p203 = scmp.le.s32.totalorder 1, %s15
      %p204 = scmp.lt.s32.totalorder %s15, 4
      %p205 = pnand %p203, %p204
      %p206 = pneg %p205
      // Predicated region
      $region29: #{projection_forward.2} parent=5 // pred_check
        _
      $region30: #{projection_forward.2} parent=5 // pred_check_branch
        %208 = sbr.rel (%p205) target = $region32
      $region31: #{projection_forward.2} parent=5 // pred_region
        %s209 = ssub.s32 %s15, 1
        %s210 = sand.u32 %s28, 1
        %s211 = scalar_lea.sflag [#allocation3], %s210
        %s212 = sand.u32 %s28, 1
        %s213 = smul.addr %s212, 256
        %s214 = scalar_lea.vmem [#allocation2], %s213
        // Predicated region
        $region33: #{projection_forward.2} parent=31 // pred_check
          %p215 = pneg %p41
        $region34: #{projection_forward.2} parent=31 // pred_check_branch
          %217 = sbr.rel (%p215) target = $region36
        $region35: #{projection_forward.2} parent=31 // pred_region
          %219 = dma.done %s211, 4096
        $region36: #{projection_forward.2} parent=31 // pred_fallthru
          _
        // Predicated region
        $region37: #{projection_forward.2} parent=31 // pred_check
          %p220 = pneg %p62
        $region38: #{projection_forward.2} parent=31 // pred_check_branch
          %222 = sbr.rel (%p220) target = $region40
        $region39: #{projection_forward.2} parent=31 // pred_region
          %224 = dma.done [#allocation5], 4096
        $region40: #{projection_forward.2} parent=31 // pred_fallthru
          _
        // Predicated region
        $region41: #{projection_forward.2} parent=31 // pred_check
          %p225 = pneg %p83
        $region42: #{projection_forward.2} parent=31 // pred_check_branch
          %227 = sbr.rel (%p225) target = $region44
        $region43: #{projection_forward.2} parent=31 // pred_region
          %229 = dma.done [#allocation5], 32
        $region44: #{projection_forward.2} parent=31 // pred_fallthru
          _
        %s230 = sand.u32 %s28, 1
        %s231 = scalar_lea.sflag [#allocation3], %s230
        %s232 = sand.u32 %s28, 1
        %s233 = smul.addr %s232, 256
        %s234 = scalar_lea.vmem [#allocation2], %s233
        %p235 = pneg %p41
        %p236 = pneg %p38
        %p237 = pneg %p62
        %p238 = pneg %p59
        %p239 = pneg %p83
        %p240 = pneg %p80
        %p241 = pneg %p109
        %p242 = pneg %p106
        %s243 = smul.u32 16, %s20
        %p244 = scmp.lt.s32.totalorder %s243, 47
        %s245 = scalar_select %p244, %s243, 47
        %s246 = smul.addr %s245, 2
        %s247 = smul.addr %s246, 4
        %s248 = scalar_lea.vmem %s3, %s247
        %p249 = pneg %p135
        %p250 = pneg %p132
        %p251 = scmp.lt.s32.totalorder %s20, 2
        %s252 = scalar_select %p251, %s20, 2
        %s253 = smul.addr %s252, 2
        %s254 = smul.addr %s253, 2
        %s255 = scalar_lea.vmem %s4, %s254
        %s256 = smul.u32 16, %s20
        %s257 = smul.u32 16, %s20
        %p258 = scmp.lt.s32.totalorder %s257, 47
        %s259 = scalar_select %p258, %s257, 47
        %s260 = smul.addr %s259, 2
        %s261 = smul.addr %s260, 4
        %s262 = scalar_lea.vmem %s3, %s261
        %s263 = smul.u32 16, %s20
        %p264 = scmp.lt.s32.totalorder %s20, 2
        %s265 = scalar_select %p264, %s20, 2
        %s266 = smul.addr %s265, 2
        %s267 = smul.addr %s266, 2
        %s268 = scalar_lea.vmem %s4, %s267
        %v269 = vld [vmem:[%s214] sm:$0xff]
        %v270 = vld [vmem:[%s214 + $0x8] sm:$0xff]
        %v271 = vld [vmem:[%s214 + $0x10] sm:$0xff]
        %v272 = vld [vmem:[%s214 + $0x18] sm:$0xff]
        %v273 = vld [vmem:[%s214 + $0x20] sm:$0xff]
        %v274 = vld [vmem:[%s214 + $0x28] sm:$0xff]
        %v275 = vld [vmem:[%s214 + $0x30] sm:$0xff]
        %v276 = vld [vmem:[%s214 + $0x38] sm:$0xff]
        %v277 = vld [vmem:[%s214 + $0x40] sm:$0xff]
        %v278 = vld [vmem:[%s214 + $0x48] sm:$0xff]
        %v279 = vld [vmem:[%s214 + $0x50] sm:$0xff]
        %v280 = vld [vmem:[%s214 + $0x58] sm:$0xff]
        %v281 = vld [vmem:[%s214 + $0x60] sm:$0xff]
        %v282 = vld [vmem:[%s214 + $0x68] sm:$0xff]
        %v283 = vld [vmem:[%s214 + $0x70] sm:$0xff]
        %v284 = vld [vmem:[%s214 + $0x78] sm:$0xff]
        %v285 = vld [vmem:[%s214 + $0x80] sm:$0xff]
        %v286 = vld [vmem:[%s214 + $0x88] sm:$0xff]
        %v287 = vld [vmem:[%s214 + $0x90] sm:$0xff]
        %v288 = vld [vmem:[%s214 + $0x98] sm:$0xff]
        %v289 = vld [vmem:[%s214 + $0xa0] sm:$0xff]
        %v290 = vld [vmem:[%s214 + $0xa8] sm:$0xff]
        %v291 = vld [vmem:[%s214 + $0xb0] sm:$0xff]
        %v292 = vld [vmem:[%s214 + $0xb8] sm:$0xff]
        %v293 = vld [vmem:[%s214 + $0xc0] sm:$0xff]
        %v294 = vld [vmem:[%s214 + $0xc8] sm:$0xff]
        %v295 = vld [vmem:[%s214 + $0xd0] sm:$0xff]
        %v296 = vld [vmem:[%s214 + $0xd8] sm:$0xff]
        %v297 = vld [vmem:[%s214 + $0xe0] sm:$0xff]
        %v298 = vld [vmem:[%s214 + $0xe8] sm:$0xff]
        %v299 = vld [vmem:[%s214 + $0xf0] sm:$0xff]
        %v300 = vld [vmem:[%s214 + $0xf8] sm:$0xff]
        %v301 = vpack.c.bf16 %v271, %v269
        %v302 = vpack.c.bf16 %v272, %v270
        %v303 = vpack.c.bf16 %v275, %v273
        %v304 = vpack.c.bf16 %v276, %v274
        %v305 = vpack.c.bf16 %v279, %v277
        %v306 = vpack.c.bf16 %v280, %v278
        %v307 = vpack.c.bf16 %v283, %v281
        %v308 = vpack.c.bf16 %v284, %v282
        %v309 = vpack.c.bf16 %v287, %v285
        %v310 = vpack.c.bf16 %v288, %v286
        %v311 = vpack.c.bf16 %v291, %v289
        %v312 = vpack.c.bf16 %v292, %v290
        %v313 = vpack.c.bf16 %v295, %v293
        %v314 = vpack.c.bf16 %v296, %v294
        %v315 = vpack.c.bf16 %v299, %v297
        %v316 = vpack.c.bf16 %v300, %v298
        %v317 = vld [vmem:[#allocation4] sm:$0xff]
        %v318 = vld [vmem:[#allocation4 + $0x8] sm:$0xff]
        %v319 = vld [vmem:[#allocation4 + $0x10] sm:$0xff]
        %v320 = vld [vmem:[#allocation4 + $0x18] sm:$0xff]
        %v321 = vld [vmem:[#allocation4 + $0x20] sm:$0xff]
        %v322 = vld [vmem:[#allocation4 + $0x28] sm:$0xff]
        %v323 = vld [vmem:[#allocation4 + $0x30] sm:$0xff]
        %v324 = vld [vmem:[#allocation4 + $0x38] sm:$0xff]
        %v325 = vld [vmem:[#allocation4 + $0x40] sm:$0xff]
        %v326 = vld [vmem:[#allocation4 + $0x48] sm:$0xff]
        %v327 = vld [vmem:[#allocation4 + $0x50] sm:$0xff]
        %v328 = vld [vmem:[#allocation4 + $0x58] sm:$0xff]
        %v329 = vld [vmem:[#allocation4 + $0x60] sm:$0xff]
        %v330 = vld [vmem:[#allocation4 + $0x68] sm:$0xff]
        %v331 = vld [vmem:[#allocation4 + $0x70] sm:$0xff]
        %v332 = vld [vmem:[#allocation4 + $0x78] sm:$0xff]
        %v333 = vld [vmem:[#allocation4 + $0x80] sm:$0xff]
        %v334 = vld [vmem:[#allocation4 + $0x88] sm:$0xff]
        %v335 = vld [vmem:[#allocation4 + $0x90] sm:$0xff]
        %v336 = vld [vmem:[#allocation4 + $0x98] sm:$0xff]
        %v337 = vld [vmem:[#allocation4 + $0xa0] sm:$0xff]
        %v338 = vld [vmem:[#allocation4 + $0xa8] sm:$0xff]
        %v339 = vld [vmem:[#allocation4 + $0xb0] sm:$0xff]
        %v340 = vld [vmem:[#allocation4 + $0xb8] sm:$0xff]
        %v341 = vld [vmem:[#allocation4 + $0xc0] sm:$0xff]
        %v342 = vld [vmem:[#allocation4 + $0xc8] sm:$0xff]
        %v343 = vld [vmem:[#allocation4 + $0xd0] sm:$0xff]
        %v344 = vld [vmem:[#allocation4 + $0xd8] sm:$0xff]
        %v345 = vld [vmem:[#allocation4 + $0xe0] sm:$0xff]
        %v346 = vld [vmem:[#allocation4 + $0xe8] sm:$0xff]
        %v347 = vld [vmem:[#allocation4 + $0xf0] sm:$0xff]
        %v348 = vld [vmem:[#allocation4 + $0xf8] sm:$0xff]
        %v349 = vld [vmem:[#allocation6] sm:$0x3]
        %v351 = vperm.slane %v349, 0
        %v352 = vperm.slane %v349, 1
        %v387 = vunpack.c.l.b16 %v317
        %v388 = vunpack.c.h.b16 %v317
        %v389 = vunpack.c.l.b16 %v318
        %v390 = vunpack.c.h.b16 %v318
        %v391 = vunpack.c.l.b16 %v319
        %v392 = vunpack.c.h.b16 %v319
        %v393 = vunpack.c.l.b16 %v320
        %v394 = vunpack.c.h.b16 %v320
        %v395 = vunpack.c.l.b16 %v321
        %v396 = vunpack.c.h.b16 %v321
        %v397 = vunpack.c.l.b16 %v322
        %v398 = vunpack.c.h.b16 %v322
        %v399 = vunpack.c.l.b16 %v323
        %v400 = vunpack.c.h.b16 %v323
        %v401 = vunpack.c.l.b16 %v324
        %v402 = vunpack.c.h.b16 %v324
        %v403 = vunpack.c.l.b16 %v325
        %v404 = vunpack.c.h.b16 %v325
        %v405 = vunpack.c.l.b16 %v326
        %v406 = vunpack.c.h.b16 %v326
        %v407 = vunpack.c.l.b16 %v327
        %v408 = vunpack.c.h.b16 %v327
        %v409 = vunpack.c.l.b16 %v328
        %v410 = vunpack.c.h.b16 %v328
        %v411 = vunpack.c.l.b16 %v329
        %v412 = vunpack.c.h.b16 %v329
        %v413 = vunpack.c.l.b16 %v330
        %v414 = vunpack.c.h.b16 %v330
        %v415 = vunpack.c.l.b16 %v331
        %v416 = vunpack.c.h.b16 %v331
        %v417 = vunpack.c.l.b16 %v332
        %v418 = vunpack.c.h.b16 %v332
        %v419 = vunpack.c.l.b16 %v333
        %v420 = vunpack.c.h.b16 %v333
        %v421 = vunpack.c.l.b16 %v334
        %v422 = vunpack.c.h.b16 %v334
        %v423 = vunpack.c.l.b16 %v335
        %v424 = vunpack.c.h.b16 %v335
        %v425 = vunpack.c.l.b16 %v336
        %v426 = vunpack.c.h.b16 %v336
        %v427 = vunpack.c.l.b16 %v337
        %v428 = vunpack.c.h.b16 %v337
        %v429 = vunpack.c.l.b16 %v338
        %v430 = vunpack.c.h.b16 %v338
        %v431 = vunpack.c.l.b16 %v339
        %v432 = vunpack.c.h.b16 %v339
        %v433 = vunpack.c.l.b16 %v340
        %v434 = vunpack.c.h.b16 %v340
        %v435 = vunpack.c.l.b16 %v341
        %v436 = vunpack.c.h.b16 %v341
        %v437 = vunpack.c.l.b16 %v342
        %v438 = vunpack.c.h.b16 %v342
        %v439 = vunpack.c.l.b16 %v343
        %v440 = vunpack.c.h.b16 %v343
        %v441 = vunpack.c.l.b16 %v344
        %v442 = vunpack.c.h.b16 %v344
        %v443 = vunpack.c.l.b16 %v345
        %v444 = vunpack.c.h.b16 %v345
        %v445 = vunpack.c.l.b16 %v346
        %v446 = vunpack.c.h.b16 %v346
        %v447 = vunpack.c.l.b16 %v347
        %v448 = vunpack.c.h.b16 %v347
        %v449 = vunpack.c.l.b16 %v348
        %v450 = vunpack.c.h.b16 %v348
        %v451 = vpack.c.b16 %v389, %v387
        %v452 = vpack.c.b16 %v390, %v388
        %v453 = vpack.c.b16 %v393, %v391
        %v454 = vpack.c.b16 %v394, %v392
        %v455 = vpack.c.b16 %v397, %v395
        %v456 = vpack.c.b16 %v398, %v396
        %v457 = vpack.c.b16 %v401, %v399
        %v458 = vpack.c.b16 %v402, %v400
        %v459 = vpack.c.b16 %v405, %v403
        %v460 = vpack.c.b16 %v406, %v404
        %v461 = vpack.c.b16 %v409, %v407
        %v462 = vpack.c.b16 %v410, %v408
        %v463 = vpack.c.b16 %v413, %v411
        %v464 = vpack.c.b16 %v414, %v412
        %v465 = vpack.c.b16 %v417, %v415
        %v466 = vpack.c.b16 %v418, %v416
        %v467 = vpack.c.b16 %v421, %v419
        %v468 = vpack.c.b16 %v422, %v420
        %v469 = vpack.c.b16 %v425, %v423
        %v470 = vpack.c.b16 %v426, %v424
        %v471 = vpack.c.b16 %v429, %v427
        %v472 = vpack.c.b16 %v430, %v428
        %v473 = vpack.c.b16 %v433, %v431
        %v474 = vpack.c.b16 %v434, %v432
        %v475 = vpack.c.b16 %v437, %v435
        %v476 = vpack.c.b16 %v438, %v436
        %v477 = vpack.c.b16 %v441, %v439
        %v478 = vpack.c.b16 %v442, %v440
        %v479 = vpack.c.b16 %v445, %v443
        %v480 = vpack.c.b16 %v446, %v444
        %v481 = vpack.c.b16 %v449, %v447
        %v482 = vpack.c.b16 %v450, %v448
        %515 = vmatpush.bf16.msra.mxu0 %v465
        %516 = vmatpush.bf16.msra.mxu0 %v463
        %517 = vmatpush.bf16.msra.mxu0 %v461
        %518 = vmatpush.bf16.msra.mxu0 %v459
        %519 = vmatpush.bf16.msra.mxu0 %v457
        %520 = vmatpush.bf16.msra.mxu0 %v455
        %521 = vmatpush.bf16.msra.mxu0 %v453
        %522 = vmatpush.bf16.msra.mxu0 %v451
        %523 = vmatmul.bf16.gmra.mxu0 %v301
        %v524 = vpop.f32.mrf.mxu0
        %v525 = vadd.f32 %v351, %v524
        %v526 = vpop.f32.mrf.mxu0
        %v527 = vadd.f32 %v351, %v526
        %528 = vmatmul.bf16.gmra.mxu0 %v303
        %v529 = vpop.f32.mrf.mxu0
        %v530 = vadd.f32 %v351, %v529
        %v531 = vpop.f32.mrf.mxu0
        %v532 = vadd.f32 %v351, %v531
        %533 = vmatmul.bf16.gmra.mxu0 %v305
        %v534 = vpop.f32.mrf.mxu0
        %v535 = vadd.f32 %v351, %v534
        %v536 = vpop.f32.mrf.mxu0
        %v537 = vadd.f32 %v351, %v536
        %538 = vmatmul.bf16.gmra.mxu0 %v307
        %v539 = vpop.f32.mrf.mxu0
        %v540 = vadd.f32 %v351, %v539
        %v541 = vpop.f32.mrf.mxu0
        %v542 = vadd.f32 %v351, %v541
        %543 = vmatmul.bf16.gmra.mxu0 %v309
        %v544 = vpop.f32.mrf.mxu0
        %v545 = vadd.f32 %v351, %v544
        %v546 = vpop.f32.mrf.mxu0
        %v547 = vadd.f32 %v351, %v546
        %548 = vmatmul.bf16.gmra.mxu0 %v311
        %v549 = vpop.f32.mrf.mxu0
        %v550 = vadd.f32 %v351, %v549
        %v551 = vpop.f32.mrf.mxu0
        %v552 = vadd.f32 %v351, %v551
        %553 = vmatmul.bf16.gmra.mxu0 %v313
        %v554 = vpop.f32.mrf.mxu0
        %v555 = vadd.f32 %v351, %v554
        %v556 = vpop.f32.mrf.mxu0
        %v557 = vadd.f32 %v351, %v556
        %558 = vmatmul.bf16.gmra.mxu0 %v315
        %v559 = vpop.f32.mrf.mxu0
        %v560 = vadd.f32 %v351, %v559
        %v561 = vpop.f32.mrf.mxu0
        %v562 = vadd.f32 %v351, %v561
        %563 = vdwg.mxu0
        %564 = vmatpush.bf16.msra.mxu0 %v481
        %565 = vmatpush.bf16.msra.mxu0 %v479
        %566 = vmatpush.bf16.msra.mxu0 %v477
        %567 = vmatpush.bf16.msra.mxu0 %v475
        %568 = vmatpush.bf16.msra.mxu0 %v473
        %569 = vmatpush.bf16.msra.mxu0 %v471
        %570 = vmatpush.bf16.msra.mxu0 %v469
        %571 = vmatpush.bf16.msra.mxu0 %v467
        %572 = vmatmul.bf16.gmra.mxu0 %v302
        %v573 = vpop.f32.mrf.mxu0
        %v574 = vadd.f32 %v525, %v573
        %v575 = vpop.f32.mrf.mxu0
        %v576 = vadd.f32 %v527, %v575
        %577 = vmatmul.bf16.gmra.mxu0 %v304
        %v578 = vpop.f32.mrf.mxu0
        %v579 = vadd.f32 %v530, %v578
        %v580 = vpop.f32.mrf.mxu0
        %v581 = vadd.f32 %v532, %v580
        %582 = vmatmul.bf16.gmra.mxu0 %v306
        %v583 = vpop.f32.mrf.mxu0
        %v584 = vadd.f32 %v535, %v583
        %v585 = vpop.f32.mrf.mxu0
        %v586 = vadd.f32 %v537, %v585
        %587 = vmatmul.bf16.gmra.mxu0 %v308
        %v588 = vpop.f32.mrf.mxu0
        %v589 = vadd.f32 %v540, %v588
        %v590 = vpop.f32.mrf.mxu0
        %v591 = vadd.f32 %v542, %v590
        %592 = vmatmul.bf16.gmra.mxu0 %v310
        %v593 = vpop.f32.mrf.mxu0
        %v594 = vadd.f32 %v545, %v593
        %v595 = vpop.f32.mrf.mxu0
        %v596 = vadd.f32 %v547, %v595
        %597 = vmatmul.bf16.gmra.mxu0 %v312
        %v598 = vpop.f32.mrf.mxu0
        %v599 = vadd.f32 %v550, %v598
        %v600 = vpop.f32.mrf.mxu0
        %v601 = vadd.f32 %v552, %v600
        %602 = vmatmul.bf16.gmra.mxu0 %v314
        %v603 = vpop.f32.mrf.mxu0
        %v604 = vadd.f32 %v555, %v603
        %v605 = vpop.f32.mrf.mxu0
        %v606 = vadd.f32 %v557, %v605
        %607 = vmatmul.bf16.gmra.mxu0 %v316
        %v608 = vpop.f32.mrf.mxu0
        %v609 = vadd.f32 %v560, %v608
        %v610 = vpop.f32.mrf.mxu0
        %v611 = vadd.f32 %v562, %v610
        %612 = vdwg.mxu0
        %613 = vmatpush.bf16.msra.mxu0 %v466
        %614 = vmatpush.bf16.msra.mxu0 %v464
        %615 = vmatpush.bf16.msra.mxu0 %v462
        %616 = vmatpush.bf16.msra.mxu0 %v460
        %617 = vmatpush.bf16.msra.mxu0 %v458
        %618 = vmatpush.bf16.msra.mxu0 %v456
        %619 = vmatpush.bf16.msra.mxu0 %v454
        %620 = vmatpush.bf16.msra.mxu0 %v452
        %621 = vmatmul.bf16.gmra.mxu0 %v301
        %v622 = vpop.f32.mrf.mxu0
        %v623 = vadd.f32 %v352, %v622
        %v624 = vpop.f32.mrf.mxu0
        %v625 = vadd.f32 %v352, %v624
        %626 = vmatmul.bf16.gmra.mxu0 %v303
        %v627 = vpop.f32.mrf.mxu0
        %v628 = vadd.f32 %v352, %v627
        %v629 = vpop.f32.mrf.mxu0
        %v630 = vadd.f32 %v352, %v629
        %631 = vmatmul.bf16.gmra.mxu0 %v305
        %v632 = vpop.f32.mrf.mxu0
        %v633 = vadd.f32 %v352, %v632
        %v634 = vpop.f32.mrf.mxu0
        %v635 = vadd.f32 %v352, %v634
        %636 = vmatmul.bf16.gmra.mxu0 %v307
        %v637 = vpop.f32.mrf.mxu0
        %v638 = vadd.f32 %v352, %v637
        %v639 = vpop.f32.mrf.mxu0
        %v640 = vadd.f32 %v352, %v639
        %641 = vmatmul.bf16.gmra.mxu0 %v309
        %v642 = vpop.f32.mrf.mxu0
        %v643 = vadd.f32 %v352, %v642
        %v644 = vpop.f32.mrf.mxu0
        %v645 = vadd.f32 %v352, %v644
        %646 = vmatmul.bf16.gmra.mxu0 %v311
        %v647 = vpop.f32.mrf.mxu0
        %v648 = vadd.f32 %v352, %v647
        %v649 = vpop.f32.mrf.mxu0
        %v650 = vadd.f32 %v352, %v649
        %651 = vmatmul.bf16.gmra.mxu0 %v313
        %v652 = vpop.f32.mrf.mxu0
        %v653 = vadd.f32 %v352, %v652
        %v654 = vpop.f32.mrf.mxu0
        %v655 = vadd.f32 %v352, %v654
        %656 = vmatmul.bf16.gmra.mxu0 %v315
        %v657 = vpop.f32.mrf.mxu0
        %v658 = vadd.f32 %v352, %v657
        %v659 = vpop.f32.mrf.mxu0
        %v660 = vadd.f32 %v352, %v659
        %661 = vdwg.mxu0
        %662 = vmatpush.bf16.msra.mxu0 %v482
        %663 = vmatpush.bf16.msra.mxu0 %v480
        %664 = vmatpush.bf16.msra.mxu0 %v478
        %665 = vmatpush.bf16.msra.mxu0 %v476
        %666 = vmatpush.bf16.msra.mxu0 %v474
        %667 = vmatpush.bf16.msra.mxu0 %v472
        %668 = vmatpush.bf16.msra.mxu0 %v470
        %669 = vmatpush.bf16.msra.mxu0 %v468
        %670 = vmatmul.bf16.gmra.mxu0 %v302
        %v671 = vpop.f32.mrf.mxu0
        %v672 = vadd.f32 %v623, %v671
        %v673 = vpop.f32.mrf.mxu0
        %v674 = vadd.f32 %v625, %v673
        %675 = vmatmul.bf16.gmra.mxu0 %v304
        %v676 = vpop.f32.mrf.mxu0
        %v677 = vadd.f32 %v628, %v676
        %v678 = vpop.f32.mrf.mxu0
        %v679 = vadd.f32 %v630, %v678
        %680 = vmatmul.bf16.gmra.mxu0 %v306
        %v681 = vpop.f32.mrf.mxu0
        %v682 = vadd.f32 %v633, %v681
        %v683 = vpop.f32.mrf.mxu0
        %v684 = vadd.f32 %v635, %v683
        %685 = vmatmul.bf16.gmra.mxu0 %v308
        %v686 = vpop.f32.mrf.mxu0
        %v687 = vadd.f32 %v638, %v686
        %v688 = vpop.f32.mrf.mxu0
        %v689 = vadd.f32 %v640, %v688
        %690 = vmatmul.bf16.gmra.mxu0 %v310
        %v691 = vpop.f32.mrf.mxu0
        %v692 = vadd.f32 %v643, %v691
        %v693 = vpop.f32.mrf.mxu0
        %v694 = vadd.f32 %v645, %v693
        %695 = vmatmul.bf16.gmra.mxu0 %v312
        %v696 = vpop.f32.mrf.mxu0
        %v697 = vadd.f32 %v648, %v696
        %v698 = vpop.f32.mrf.mxu0
        %v699 = vadd.f32 %v650, %v698
        %700 = vmatmul.bf16.gmra.mxu0 %v314
        %v701 = vpop.f32.mrf.mxu0
        %v702 = vadd.f32 %v653, %v701
        %v703 = vpop.f32.mrf.mxu0
        %v704 = vadd.f32 %v655, %v703
        %705 = vmatmul.bf16.gmra.mxu0 %v316
        %v706 = vpop.f32.mrf.mxu0
        %v707 = vadd.f32 %v658, %v706
        %v708 = vpop.f32.mrf.mxu0
        %v709 = vadd.f32 %v660, %v708
        %710 = vdwg.mxu0
        %v711 = vpack.c.bf16 %v672, %v574
        %v712 = vpack.c.bf16 %v674, %v576
        %v713 = vpack.c.bf16 %v677, %v579
        %v714 = vpack.c.bf16 %v679, %v581
        %v715 = vpack.c.bf16 %v682, %v584
        %v716 = vpack.c.bf16 %v684, %v586
        %v717 = vpack.c.bf16 %v687, %v589
        %v718 = vpack.c.bf16 %v689, %v591
        %v719 = vpack.c.bf16 %v692, %v594
        %v720 = vpack.c.bf16 %v694, %v596
        %v721 = vpack.c.bf16 %v697, %v599
        %v722 = vpack.c.bf16 %v699, %v601
        %v723 = vpack.c.bf16 %v702, %v604
        %v724 = vpack.c.bf16 %v704, %v606
        %v725 = vpack.c.bf16 %v707, %v609
        %v726 = vpack.c.bf16 %v709, %v611
        %727 = vst [vmem:[%s262] sm:$0xff] %v711
        %728 = vst [vmem:[%s262 + $0x8] sm:$0xff] %v712
        %729 = vst [vmem:[%s262 + $0x10] sm:$0xff] %v713
        %730 = vst [vmem:[%s262 + $0x18] sm:$0xff] %v714
        %731 = vst [vmem:[%s262 + $0x20] sm:$0xff] %v715
        %732 = vst [vmem:[%s262 + $0x28] sm:$0xff] %v716
        %733 = vst [vmem:[%s262 + $0x30] sm:$0xff] %v717
        %734 = vst [vmem:[%s262 + $0x38] sm:$0xff] %v718
        %735 = vst [vmem:[%s262 + $0x40] sm:$0xff] %v719
        %736 = vst [vmem:[%s262 + $0x48] sm:$0xff] %v720
        %737 = vst [vmem:[%s262 + $0x50] sm:$0xff] %v721
        %738 = vst [vmem:[%s262 + $0x58] sm:$0xff] %v722
        %739 = vst [vmem:[%s262 + $0x60] sm:$0xff] %v723
        %740 = vst [vmem:[%s262 + $0x68] sm:$0xff] %v724
        %741 = vst [vmem:[%s262 + $0x70] sm:$0xff] %v725
        %742 = vst [vmem:[%s262 + $0x78] sm:$0xff] %v726
        %v743 = vadd.f32 %v574, %v576
        %v744 = vadd.f32 %v743, %v579
        %v745 = vadd.f32 %v744, %v581
        %v746 = vadd.f32 %v745, %v584
        %v747 = vadd.f32 %v746, %v586
        %v748 = vadd.f32 %v747, %v589
        %v749 = vadd.f32 %v748, %v591
        %v750 = vadd.f32 %v749, %v594
        %v751 = vadd.f32 %v750, %v596
        %v752 = vadd.f32 %v751, %v599
        %v753 = vadd.f32 %v752, %v601
        %v754 = vadd.f32 %v753, %v604
        %v755 = vadd.f32 %v754, %v606
        %v756 = vadd.f32 %v755, %v609
        %v757 = vadd.f32 %v756, %v611
        %v758 = vrot.slane %v757, 4
        %v759 = vadd.f32 %v757, %v758
        %v760 = vrot.slane %v759, 2
        %v761 = vadd.f32 %v759, %v760
        %v762 = vrot.slane %v761, 1
        %v763 = vadd.f32 %v761, %v762
        %v764 = vadd.f32 %v672, %v674
        %v765 = vadd.f32 %v764, %v677
        %v766 = vadd.f32 %v765, %v679
        %v767 = vadd.f32 %v766, %v682
        %v768 = vadd.f32 %v767, %v684
        %v769 = vadd.f32 %v768, %v687
        %v770 = vadd.f32 %v769, %v689
        %v771 = vadd.f32 %v770, %v692
        %v772 = vadd.f32 %v771, %v694
        %v773 = vadd.f32 %v772, %v697
        %v774 = vadd.f32 %v773, %v699
        %v775 = vadd.f32 %v774, %v702
        %v776 = vadd.f32 %v775, %v704
        %v777 = vadd.f32 %v776, %v707
        %v778 = vadd.f32 %v777, %v709
        %v779 = vrot.slane %v778, 4
        %v780 = vadd.f32 %v778, %v779
        %v781 = vrot.slane %v780, 2
        %v782 = vadd.f32 %v780, %v781
        %v783 = vrot.slane %v782, 1
        %v784 = vadd.f32 %v782, %v783
        %v785 = vmul.f32 %v574, %v574
        %v786 = vmul.f32 %v672, %v672
        %v787 = vmul.f32 %v576, %v576
        %v788 = vmul.f32 %v674, %v674
        %v789 = vmul.f32 %v579, %v579
        %v790 = vmul.f32 %v677, %v677
        %v791 = vmul.f32 %v581, %v581
        %v792 = vmul.f32 %v679, %v679
        %v793 = vmul.f32 %v584, %v584
        %v794 = vmul.f32 %v682, %v682
        %v795 = vmul.f32 %v586, %v586
        %v796 = vmul.f32 %v684, %v684
        %v797 = vmul.f32 %v589, %v589
        %v798 = vmul.f32 %v687, %v687
        %v799 = vmul.f32 %v591, %v591
        %v800 = vmul.f32 %v689, %v689
        %v801 = vmul.f32 %v594, %v594
        %v802 = vmul.f32 %v692, %v692
        %v803 = vmul.f32 %v596, %v596
        %v804 = vmul.f32 %v694, %v694
        %v805 = vmul.f32 %v599, %v599
        %v806 = vmul.f32 %v697, %v697
        %v807 = vmul.f32 %v601, %v601
        %v808 = vmul.f32 %v699, %v699
        %v809 = vmul.f32 %v604, %v604
        %v810 = vmul.f32 %v702, %v702
        %v811 = vmul.f32 %v606, %v606
        %v812 = vmul.f32 %v704, %v704
        %v813 = vmul.f32 %v609, %v609
        %v814 = vmul.f32 %v707, %v707
        %v815 = vmul.f32 %v611, %v611
        %v816 = vmul.f32 %v709, %v709
        %v817 = vadd.f32 %v785, %v787
        %v818 = vadd.f32 %v817, %v789
        %v819 = vadd.f32 %v818, %v791
        %v820 = vadd.f32 %v819, %v793
        %v821 = vadd.f32 %v820, %v795
        %v822 = vadd.f32 %v821, %v797
        %v823 = vadd.f32 %v822, %v799
        %v824 = vadd.f32 %v823, %v801
        %v825 = vadd.f32 %v824, %v803
        %v826 = vadd.f32 %v825, %v805
        %v827 = vadd.f32 %v826, %v807
        %v828 = vadd.f32 %v827, %v809
        %v829 = vadd.f32 %v828, %v811
        %v830 = vadd.f32 %v829, %v813
        %v831 = vadd.f32 %v830, %v815
        %v832 = vrot.slane %v831, 4
        %v833 = vadd.f32 %v831, %v832
        %v834 = vrot.slane %v833, 2
        %v835 = vadd.f32 %v833, %v834
        %v836 = vrot.slane %v835, 1
        %v837 = vadd.f32 %v835, %v836
        %v838 = vadd.f32 %v786, %v788
        %v839 = vadd.f32 %v838, %v790
        %v840 = vadd.f32 %v839, %v792
        %v841 = vadd.f32 %v840, %v794
        %v842 = vadd.f32 %v841, %v796
        %v843 = vadd.f32 %v842, %v798
        %v844 = vadd.f32 %v843, %v800
        %v845 = vadd.f32 %v844, %v802
        %v846 = vadd.f32 %v845, %v804
        %v847 = vadd.f32 %v846, %v806
        %v848 = vadd.f32 %v847, %v808
        %v849 = vadd.f32 %v848, %v810
        %v850 = vadd.f32 %v849, %v812
        %v851 = vadd.f32 %v850, %v814
        %v852 = vadd.f32 %v851, %v816
        %v853 = vrot.slane %v852, 4
        %v854 = vadd.f32 %v852, %v853
        %v855 = vrot.slane %v854, 2
        %v856 = vadd.f32 %v854, %v855
        %v857 = vrot.slane %v856, 1
        %v858 = vadd.f32 %v856, %v857
        %vm859 = vcmask 1040384
        %v860 = vsel %vm859, %v763, %v837
        %v861 = vsel %vm859, %v784, %v858
        %v864 = vrot.slane %v861, 6
        %vm865 = vcmask 1041408
        %v866 = vsel %vm865, %v860, %v864
        %868 = vst [vmem:[%s268] sm:$0xf] %v866
        %s869 = smul.u32 16, %s20
        %p870 = scmp.lt.s32.totalorder %s869, 47
        %s871 = scalar_select %p870, %s869, 47
        %s872 = smul.addr %s871, 2
        %s873 = smul.addr %s872, 4
        %s874 = scalar_lea.vmem %s3, %s873
        %p875 = scmp.lt.s32.totalorder %s20, 2
        %s876 = scalar_select %p875, %s20, 2
        %s877 = smul.addr %s876, 2
        %s878 = smul.addr %s877, 2
        %s879 = scalar_lea.vmem %s4, %s878
        // Predicated region
        $region45: #{projection_forward.2} parent=31 // pred_check
          %p880 = pneg %p106
        $region46: #{projection_forward.2} parent=31 // pred_check_branch
          %882 = sbr.rel (%p880) target = $region48
        $region47: #{projection_forward.2} parent=31 // pred_region
          %s883 = smul.u32 16, %s20
        $region48: #{projection_forward.2} parent=31 // pred_fallthru
          _
        // Predicated region
        $region49: #{projection_forward.2} parent=31 // pred_check
          %p884 = pneg %p132
        $region50: #{projection_forward.2} parent=31 // pred_check_branch
          %886 = sbr.rel (%p884) target = $region52
        $region51: #{projection_forward.2} parent=31 // pred_region
          _
        $region52: #{projection_forward.2} parent=31 // pred_fallthru
          _
      $region32: #{projection_forward.2} parent=5 // pred_fallthru
        _
      %p887 = scmp.le.s32.totalorder 2, %s15
      // Predicated region
      $region53: #{projection_forward.2} parent=5 // pred_check
        %p888 = pneg %p887
      $region54: #{projection_forward.2} parent=5 // pred_check_branch
        %890 = sbr.rel (%p888) target = $region56
      $region55: #{projection_forward.2} parent=5 // pred_region
        %s891 = ssub.s32 %s15, 2
        // Predicated region
        $region57: #{projection_forward.2} parent=55 // pred_check
          %p892 = pneg %p112
        $region58: #{projection_forward.2} parent=55 // pred_check_branch
          %894 = sbr.rel (%p892) target = $region60
        $region59: #{projection_forward.2} parent=55 // pred_region
          %s895 = smul.u32 16, %s21
          %p896 = scmp.lt.s32.totalorder %s895, 47
          %s897 = scalar_select %p896, %s895, 47
          %s898 = smul.addr %s897, 2
          %s899 = smul.addr %s898, 4
          %s900 = scalar_lea.vmem %s3, %s899
        $region60: #{projection_forward.2} parent=55 // pred_fallthru
          _
        // Predicated region
        $region61: #{projection_forward.2} parent=55 // pred_check
          %p901 = pneg %p138
        $region62: #{projection_forward.2} parent=55 // pred_check_branch
          %903 = sbr.rel (%p901) target = $region64
        $region63: #{projection_forward.2} parent=55 // pred_region
          %p904 = scmp.lt.s32.totalorder %s21, 2
          %s905 = scalar_select %p904, %s21, 2
          %s906 = smul.addr %s905, 2
          %s907 = smul.addr %s906, 2
          %s908 = scalar_lea.vmem %s4, %s907
        $region64: #{projection_forward.2} parent=55 // pred_fallthru
          _
      $region56: #{projection_forward.2} parent=5 // pred_fallthru
        _
    $region6: #{projection_forward.2} parent=1 // loop_footer
      %s19 = sadd.s32 1, %s15
    $region7: #{projection_forward.2} parent=1 // loop_footer_branch
      %14 = sbr.rel target = $region3
    $region8: #{projection_forward.2} parent=1 // loop_exit
      _
    %909 = vsyncpa [#allocation3], 1
    %s910 = scalar_lea.sflag [#allocation3], 1
    %911 = vsyncpa %s910, 1
    %912 = vsyncpa [#allocation5], 1

// kernel: projection_forward.3
$region0: #{projection_forward.3}
  #allocation0 [shape = 'u32[]', space=smem, size = 0x4, offset = 0x4, fixed_abs, tag = 'smem constant byte address 0x4 - core index']
  #allocation1 [shape = 'u32[72,128]{1,0:T(1,128)}', space=vmem, size = 0x9000, scoped, tag = 'internal scratch']
  %s0 = inlined_call_operand.vmem [shape: bf16[384,256], index: 0, kind: input, shape index: {}]
  %s1 = inlined_call_operand.vmem [shape: f32[1,256], index: 1, kind: input, shape index: {}]
  %s2 = inlined_call_operand.vmem [shape: f32[1,256], index: 2, kind: input, shape index: {}]
  %s3 = inlined_call_operand.hbm [shape: bf16[256,128], index: 3, kind: input, shape index: {}]
  %s4 = inlined_call_operand.hbm [shape: f32[384,128], index: 4, kind: output, shape index: {}]
  %s5 = sld [smem:[#allocation0]]
  $region53: #{projection_forward.3} parent=0
    _
  %s7 = ssub.s32 1, %s5
  %s8 = scalar_select 0, %s7, %s5
  $region1: #{projection_forward.3} parent=0
    #allocation2 [shape = 'u8[65536]{0}', space=vmem, size = 0x10000, scoped, tag = 'input window, operand 3, single buffered']
    #allocation3 [shape = 's32[2]{0}', space=sflag, size = 0x8, scoped, tag = 'scoped memory for projection_forward.3']
    #allocation4 [shape = 's32[2]{0}', space=sflag, size = 0x8, scoped, tag = 'scoped memory for projection_forward.3']
    #allocation5 [shape = 'u8[131072]{0}', space=vmem, size = 0x20000, scoped, tag = 'output window, operand 0']
    %9 = vsyncpa [#allocation3], 0
    %10 = vsyncpa [#allocation4], 0
    %s11 = scalar_lea.sflag [#allocation4], 1
    %12 = vsyncpa %s11, 0
    loop: start=0, step=1, limit=5
    $region2: #{projection_forward.3} parent=1 // loop_pre_header
      _
    $region3: #{projection_forward.3} parent=1 // loop_header
      %s14 = sphi 0, %s18
      %p15 = scmp.ge.s32.totalorder %s14, 5
      %s24 = sphi 0, %s26
      %s27 = sphi 0, %s24
      %s28 = sphi 0, %s27
      %s44 = sphi 0, %s28
      %s48 = sphi 0, %s48
      %s50 = sphi 0, %s48
      %s51 = sphi 0, %s50
      %s65 = sphi 0, %s51
      %s69 = sphi 0, %s69
      %s71 = sphi 0, %s69
      %s72 = sphi 0, %s71
      %s86 = sphi 0, %s72
      %s90 = sphi 0, %s90
      %s92 = sphi 0, %s90
      %s93 = sphi 0, %s92
      %s107 = sphi 0, %s93
      %s113 = sphi 0, %s115
      %s116 = sphi 0, %s113
      %s117 = sphi 0, %s116
      %s133 = sphi 0, %s117
    $region4: #{projection_forward.3} parent=1 // loop_header_branch
      %17 = sbr.rel (%p15) target = $region8
    $region5: #{projection_forward.3} parent=1 // loop_body
      %s19 = ssub.s32 %s14, 1
      %s20 = ssub.s32 %s14, 2
      %s21 = sadd.s32 %s14, 1
      %s22 = ssub.s32 %s14, %s21
      %p23 = scmp.eq.s32.totalorder %s22, 0
      %s25 = sadd.s32 %s24, 1
      %s26 = scalar_select %p23, %s24, %s25
      %p29 = pneg %p23
      %p30 = scmp.eq.s32.totalorder %s14, 2
      %p31 = por %p29, %p30
      %p32 = scmp.ne.s32.totalorder %s24, %s27
      %p33 = scmp.eq.s32.totalorder %s14, 0
      %p34 = por %p32, %p33
      %p35 = scmp.ne.s32.totalorder %s24, %s27
      %p36 = scmp.eq.s32.totalorder %s19, 2
      %p37 = por %p35, %p36
      %p38 = scmp.ne.s32.totalorder %s27, %s28
      %p39 = scmp.eq.s32.totalorder %s19, 0
      %p40 = por %p38, %p39
      %p41 = scmp.ne.s32.totalorder %s27, %s28
      %p42 = scmp.eq.s32.totalorder %s20, 2
      %p43 = por %p41, %p42
      %p45 = scmp.ne.s32.totalorder %s28, %s44
      %p46 = scmp.eq.s32.totalorder %s20, 0
      %p47 = por %p45, %p46
      %s49 = sadd.s32 %s48, 1
      %p52 = scmp.eq.s32.totalorder %s14, 2
      %p53 = scmp.ne.s32.totalorder %s48, %s50
      %p54 = scmp.eq.s32.totalorder %s14, 0
      %p55 = por %p53, %p54
      %p56 = scmp.ne.s32.totalorder %s48, %s50
      %p57 = scmp.eq.s32.totalorder %s19, 2
      %p58 = por %p56, %p57
      %p59 = scmp.ne.s32.totalorder %s50, %s51
      %p60 = scmp.eq.s32.totalorder %s19, 0
      %p61 = por %p59, %p60
      %p62 = scmp.ne.s32.totalorder %s50, %s51
      %p63 = scmp.eq.s32.totalorder %s20, 2
      %p64 = por %p62, %p63
      %p66 = scmp.ne.s32.totalorder %s51, %s65
      %p67 = scmp.eq.s32.totalorder %s20, 0
      %p68 = por %p66, %p67
      %s70 = sadd.s32 %s69, 1
      %p73 = scmp.eq.s32.totalorder %s14, 2
      %p74 = scmp.ne.s32.totalorder %s69, %s71
      %p75 = scmp.eq.s32.totalorder %s14, 0
      %p76 = por %p74, %p75
      %p77 = scmp.ne.s32.totalorder %s69, %s71
      %p78 = scmp.eq.s32.totalorder %s19, 2
      %p79 = por %p77, %p78
      %p80 = scmp.ne.s32.totalorder %s71, %s72
      %p81 = scmp.eq.s32.totalorder %s19, 0
      %p82 = por %p80, %p81
      %p83 = scmp.ne.s32.totalorder %s71, %s72
      %p84 = scmp.eq.s32.totalorder %s20, 2
      %p85 = por %p83, %p84
      %p87 = scmp.ne.s32.totalorder %s72, %s86
      %p88 = scmp.eq.s32.totalorder %s20, 0
      %p89 = por %p87, %p88
      %s91 = sadd.s32 %s90, 1
      %p94 = scmp.eq.s32.totalorder %s14, 2
      %p95 = scmp.ne.s32.totalorder %s90, %s92
      %p96 = scmp.eq.s32.totalorder %s14, 0
      %p97 = por %p95, %p96
      %p98 = scmp.ne.s32.totalorder %s90, %s92
      %p99 = scmp.eq.s32.totalorder %s19, 2
      %p100 = por %p98, %p99
      %p101 = scmp.ne.s32.totalorder %s92, %s93
      %p102 = scmp.eq.s32.totalorder %s19, 0
      %p103 = por %p101, %p102
      %p104 = scmp.ne.s32.totalorder %s92, %s93
      %p105 = scmp.eq.s32.totalorder %s20, 2
      %p106 = por %p104, %p105
      %p108 = scmp.ne.s32.totalorder %s93, %s107
      %p109 = scmp.eq.s32.totalorder %s20, 0
      %p110 = por %p108, %p109
      %s111 = ssub.s32 %s14, %s21
      %p112 = scmp.eq.s32.totalorder %s111, 0
      %s114 = sadd.s32 %s113, 1
      %s115 = scalar_select %p112, %s113, %s114
      %p118 = pneg %p112
      %p119 = scmp.eq.s32.totalorder %s14, 2
      %p120 = por %p118, %p119
      %p121 = scmp.ne.s32.totalorder %s113, %s116
      %p122 = scmp.eq.s32.totalorder %s14, 0
      %p123 = por %p121, %p122
      %p124 = scmp.ne.s32.totalorder %s113, %s116
      %p125 = scmp.eq.s32.totalorder %s19, 2
      %p126 = por %p124, %p125
      %p127 = scmp.ne.s32.totalorder %s116, %s117
      %p128 = scmp.eq.s32.totalorder %s19, 0
      %p129 = por %p127, %p128
      %p130 = scmp.ne.s32.totalorder %s116, %s117
      %p131 = scmp.eq.s32.totalorder %s20, 2
      %p132 = por %p130, %p131
      %p134 = scmp.ne.s32.totalorder %s117, %s133
      %p135 = scmp.eq.s32.totalorder %s20, 0
      %p136 = por %p134, %p135
      %p137 = scmp.le.s32.totalorder 1, %s14
      %p138 = scmp.lt.s32.totalorder %s14, 4
      %p139 = pnand %p137, %p138
      %p140 = pneg %p139
      // Predicated region
      $region9: #{projection_forward.3} parent=5 // pred_check
        _
      $region10: #{projection_forward.3} parent=5 // pred_check_branch
        %142 = sbr.rel (%p139) target = $region12
      $region11: #{projection_forward.3} parent=5 // pred_region
        %s143 = ssub.s32 %s14, 1
        // Predicated region
        $region13: #{projection_forward.3} parent=11 // pred_check
          %p144 = pneg %p61
        $region14: #{projection_forward.3} parent=11 // pred_check_branch
          %146 = sbr.rel (%p144) target = $region16
        $region15: #{projection_forward.3} parent=11 // pred_region
          _
        $region16: #{projection_forward.3} parent=11 // pred_fallthru
          _
        // Predicated region
        $region17: #{projection_forward.3} parent=11 // pred_check
          %p147 = pneg %p82
        $region18: #{projection_forward.3} parent=11 // pred_check_branch
          %149 = sbr.rel (%p147) target = $region20
        $region19: #{projection_forward.3} parent=11 // pred_region
          _
        $region20: #{projection_forward.3} parent=11 // pred_fallthru
          _
        // Predicated region
        $region21: #{projection_forward.3} parent=11 // pred_check
          %p150 = pneg %p103
        $region22: #{projection_forward.3} parent=11 // pred_check_branch
          %152 = sbr.rel (%p150) target = $region24
        $region23: #{projection_forward.3} parent=11 // pred_region
          %154 = vsyncadd [#allocation3], 0
          %s155 = sshll.u32 %s3, 4
          %s156 = int_to_ptr.hbm [resolvable:$true] %s155
          %s157 = sshll.u32 [#allocation2], 4
          %s158 = int_to_ptr.vmem [resolvable:$true] %s157
          %163 = dma.hbm_to_vmem [thread:$0]  %s156, 2048, %s158, [#allocation3], 64, 64, 4
        $region24: #{projection_forward.3} parent=11 // pred_fallthru
          _
      $region12: #{projection_forward.3} parent=5 // pred_fallthru
        _
      %p164 = scmp.lt.s32.totalorder %s14, 3
      // Predicated region
      $region25: #{projection_forward.3} parent=5 // pred_check
        %p165 = pneg %p164
      $region26: #{projection_forward.3} parent=5 // pred_check_branch
        %167 = sbr.rel (%p165) target = $region28
      $region27: #{projection_forward.3} parent=5 // pred_region
        // Predicated region
        $region29: #{projection_forward.3} parent=27 // pred_check
          %p168 = pneg %p34
        $region30: #{projection_forward.3} parent=27 // pred_check_branch
          %170 = sbr.rel (%p168) target = $region32
        $region31: #{projection_forward.3} parent=27 // pred_region
          %s171 = smul.u32 16, %s14
          %p172 = scmp.lt.s32.totalorder %s171, 47
          %s173 = scalar_select %p172, %s171, 47
          %s174 = smul.addr %s173, 2
          %s175 = smul.addr %s174, 4
          %s176 = scalar_lea.vmem %s0, %s175
          %s177 = smul.u32 16, %s14
        $region32: #{projection_forward.3} parent=27 // pred_fallthru
          _
      $region28: #{projection_forward.3} parent=5 // pred_fallthru
        _
      %p178 = scmp.le.s32.totalorder 1, %s14
      %p179 = scmp.lt.s32.totalorder %s14, 4
      %p180 = pnand %p178, %p179
      %p181 = pneg %p180
      // Predicated region
      $region33: #{projection_forward.3} parent=5 // pred_check
        _
      $region34: #{projection_forward.3} parent=5 // pred_check_branch
        %183 = sbr.rel (%p180) target = $region36
      $region35: #{projection_forward.3} parent=5 // pred_region
        %s184 = ssub.s32 %s14, 1
        // Predicated region
        $region37: #{projection_forward.3} parent=35 // pred_check
          %p185 = pneg %p103
        $region38: #{projection_forward.3} parent=35 // pred_check_branch
          %187 = sbr.rel (%p185) target = $region40
        $region39: #{projection_forward.3} parent=35 // pred_region
          %189 = dma.done [#allocation3], 2048
        $region40: #{projection_forward.3} parent=35 // pred_fallthru
          _
        %s190 = smul.u32 16, %s19
        %p191 = scmp.lt.s32.totalorder %s190, 47
        %s192 = scalar_select %p191, %s190, 47
        %s193 = smul.addr %s192, 2
        %s194 = smul.addr %s193, 4
        %s195 = scalar_lea.vmem %s0, %s194
        %p196 = pneg %p40
        %p197 = pneg %p37
        %p198 = pneg %p61
        %p199 = pneg %p58
        %p200 = pneg %p82
        %p201 = pneg %p79
        %p202 = pneg %p103
        %p203 = pneg %p100
        %p204 = pneg %p129
        %p205 = pneg %p126
        %s206 = sand.u32 %s116, 1
        %s207 = scalar_lea.sflag [#allocation4], %s206
        %s208 = sand.u32 %s116, 1
        %s209 = smul.addr %s208, 128
        %s210 = scalar_lea.vmem [#allocation5], %s209
        %s211 = smul.u32 16, %s19
        %p212 = scmp.lt.s32.totalorder %s211, 47
        %s213 = scalar_select %p212, %s211, 47
        %s214 = smul.addr %s213, 2
        %s215 = smul.addr %s214, 4
        %s216 = scalar_lea.vmem %s0, %s215
        %s217 = smul.u32 16, %s19
        %s218 = smul.u32 16, %s19
        %v219 = vld [vmem:[%s216] sm:$0xff]
        %v220 = vld [vmem:[%s216 + $0x8] sm:$0xff]
        %v221 = vld [vmem:[%s216 + $0x10] sm:$0xff]
        %v222 = vld [vmem:[%s216 + $0x18] sm:$0xff]
        %v223 = vld [vmem:[%s216 + $0x20] sm:$0xff]
        %v224 = vld [vmem:[%s216 + $0x28] sm:$0xff]
        %v225 = vld [vmem:[%s216 + $0x30] sm:$0xff]
        %v226 = vld [vmem:[%s216 + $0x38] sm:$0xff]
        %v227 = vld [vmem:[%s216 + $0x40] sm:$0xff]
        %v228 = vld [vmem:[%s216 + $0x48] sm:$0xff]
        %v229 = vld [vmem:[%s216 + $0x50] sm:$0xff]
        %v230 = vld [vmem:[%s216 + $0x58] sm:$0xff]
        %v231 = vld [vmem:[%s216 + $0x60] sm:$0xff]
        %v232 = vld [vmem:[%s216 + $0x68] sm:$0xff]
        %v233 = vld [vmem:[%s216 + $0x70] sm:$0xff]
        %v234 = vld [vmem:[%s216 + $0x78] sm:$0xff]
        %v235 = vunpack.c.l.bf16 %v219
        %v236 = vunpack.c.h.bf16 %v219
        %v237 = vunpack.c.l.bf16 %v220
        %v238 = vunpack.c.h.bf16 %v220
        %v239 = vunpack.c.l.bf16 %v221
        %v240 = vunpack.c.h.bf16 %v221
        %v241 = vunpack.c.l.bf16 %v222
        %v242 = vunpack.c.h.bf16 %v222
        %v243 = vunpack.c.l.bf16 %v223
        %v244 = vunpack.c.h.bf16 %v223
        %v245 = vunpack.c.l.bf16 %v224
        %v246 = vunpack.c.h.bf16 %v224
        %v247 = vunpack.c.l.bf16 %v225
        %v248 = vunpack.c.h.bf16 %v225
        %v249 = vunpack.c.l.bf16 %v226
        %v250 = vunpack.c.h.bf16 %v226
        %v251 = vunpack.c.l.bf16 %v227
        %v252 = vunpack.c.h.bf16 %v227
        %v253 = vunpack.c.l.bf16 %v228
        %v254 = vunpack.c.h.bf16 %v228
        %v255 = vunpack.c.l.bf16 %v229
        %v256 = vunpack.c.h.bf16 %v229
        %v257 = vunpack.c.l.bf16 %v230
        %v258 = vunpack.c.h.bf16 %v230
        %v259 = vunpack.c.l.bf16 %v231
        %v260 = vunpack.c.h.bf16 %v231
        %v261 = vunpack.c.l.bf16 %v232
        %v262 = vunpack.c.h.bf16 %v232
        %v263 = vunpack.c.l.bf16 %v233
        %v264 = vunpack.c.h.bf16 %v233
        %v265 = vunpack.c.l.bf16 %v234
        %v266 = vunpack.c.h.bf16 %v234
        %v267 = vld [vmem:[%s1] sm:$0x3]
        %v269 = vperm.slane %v267, 0
        %v270 = vperm.slane %v267, 1
        %v273 = vmul.f32 %v235, %v269
        %v274 = vmul.f32 %v236, %v270
        %v275 = vmul.f32 %v237, %v269
        %v276 = vmul.f32 %v238, %v270
        %v277 = vmul.f32 %v239, %v269
        %v278 = vmul.f32 %v240, %v270
        %v279 = vmul.f32 %v241, %v269
        %v280 = vmul.f32 %v242, %v270
        %v281 = vmul.f32 %v243, %v269
        %v282 = vmul.f32 %v244, %v270
        %v283 = vmul.f32 %v245, %v269
        %v284 = vmul.f32 %v246, %v270
        %v285 = vmul.f32 %v247, %v269
        %v286 = vmul.f32 %v248, %v270
        %v287 = vmul.f32 %v249, %v269
        %v288 = vmul.f32 %v250, %v270
        %v289 = vmul.f32 %v251, %v269
        %v290 = vmul.f32 %v252, %v270
        %v291 = vmul.f32 %v253, %v269
        %v292 = vmul.f32 %v254, %v270
        %v293 = vmul.f32 %v255, %v269
        %v294 = vmul.f32 %v256, %v270
        %v295 = vmul.f32 %v257, %v269
        %v296 = vmul.f32 %v258, %v270
        %v297 = vmul.f32 %v259, %v269
        %v298 = vmul.f32 %v260, %v270
        %v299 = vmul.f32 %v261, %v269
        %v300 = vmul.f32 %v262, %v270
        %v301 = vmul.f32 %v263, %v269
        %v302 = vmul.f32 %v264, %v270
        %v303 = vmul.f32 %v265, %v269
        %v304 = vmul.f32 %v266, %v270
        %v305 = vld [vmem:[%s2] sm:$0x3]
        %v307 = vperm.slane %v305, 0
        %v308 = vperm.slane %v305, 1
        %v311 = vadd.f32 %v273, %v307
        %v312 = vadd.f32 %v274, %v308
        %v313 = vadd.f32 %v275, %v307
        %v314 = vadd.f32 %v276, %v308
        %v315 = vadd.f32 %v277, %v307
        %v316 = vadd.f32 %v278, %v308
        %v317 = vadd.f32 %v279, %v307
        %v318 = vadd.f32 %v280, %v308
        %v319 = vadd.f32 %v281, %v307
        %v320 = vadd.f32 %v282, %v308
        %v321 = vadd.f32 %v283, %v307
        %v322 = vadd.f32 %v284, %v308
        %v323 = vadd.f32 %v285, %v307
        %v324 = vadd.f32 %v286, %v308
        %v325 = vadd.f32 %v287, %v307
        %v326 = vadd.f32 %v288, %v308
        %v327 = vadd.f32 %v289, %v307
        %v328 = vadd.f32 %v290, %v308
        %v329 = vadd.f32 %v291, %v307
        %v330 = vadd.f32 %v292, %v308
        %v331 = vadd.f32 %v293, %v307
        %v332 = vadd.f32 %v294, %v308
        %v333 = vadd.f32 %v295, %v307
        %v334 = vadd.f32 %v296, %v308
        %v335 = vadd.f32 %v297, %v307
        %v336 = vadd.f32 %v298, %v308
        %v337 = vadd.f32 %v299, %v307
        %v338 = vadd.f32 %v300, %v308
        %v339 = vadd.f32 %v301, %v307
        %v340 = vadd.f32 %v302, %v308
        %v341 = vadd.f32 %v303, %v307
        %v342 = vadd.f32 %v304, %v308
        %v343 = vmax.f32 %v311, 0.0
        %v344 = vmax.f32 %v312, 0.0
        %v345 = vmax.f32 %v313, 0.0
        %v346 = vmax.f32 %v314, 0.0
        %v347 = vmax.f32 %v315, 0.0
        %v348 = vmax.f32 %v316, 0.0
        %v349 = vmax.f32 %v317, 0.0
        %v350 = vmax.f32 %v318, 0.0
        %v351 = vmax.f32 %v319, 0.0
        %v352 = vmax.f32 %v320, 0.0
        %v353 = vmax.f32 %v321, 0.0
        %v354 = vmax.f32 %v322, 0.0
        %v355 = vmax.f32 %v323, 0.0
        %v356 = vmax.f32 %v324, 0.0
        %v357 = vmax.f32 %v325, 0.0
        %v358 = vmax.f32 %v326, 0.0
        %v359 = vmax.f32 %v327, 0.0
        %v360 = vmax.f32 %v328, 0.0
        %v361 = vmax.f32 %v329, 0.0
        %v362 = vmax.f32 %v330, 0.0
        %v363 = vmax.f32 %v331, 0.0
        %v364 = vmax.f32 %v332, 0.0
        %v365 = vmax.f32 %v333, 0.0
        %v366 = vmax.f32 %v334, 0.0
        %v367 = vmax.f32 %v335, 0.0
        %v368 = vmax.f32 %v336, 0.0
        %v369 = vmax.f32 %v337, 0.0
        %v370 = vmax.f32 %v338, 0.0
        %v371 = vmax.f32 %v339, 0.0
        %v372 = vmax.f32 %v340, 0.0
        %v373 = vmax.f32 %v341, 0.0
        %v374 = vmax.f32 %v342, 0.0
        %v375 = vpack.c.bf16 %v345, %v343
        %v376 = vpack.c.bf16 %v346, %v344
        %v377 = vpack.c.bf16 %v349, %v347
        %v378 = vpack.c.bf16 %v350, %v348
        %v379 = vpack.c.bf16 %v353, %v351
        %v380 = vpack.c.bf16 %v354, %v352
        %v381 = vpack.c.bf16 %v357, %v355
        %v382 = vpack.c.bf16 %v358, %v356
        %v383 = vpack.c.bf16 %v361, %v359
        %v384 = vpack.c.bf16 %v362, %v360
        %v385 = vpack.c.bf16 %v365, %v363
        %v386 = vpack.c.bf16 %v366, %v364
        %v387 = vpack.c.bf16 %v369, %v367
        %v388 = vpack.c.bf16 %v370, %v368
        %v389 = vpack.c.bf16 %v373, %v371
        %v390 = vpack.c.bf16 %v374, %v372
        %v391 = vld [vmem:[#allocation2] sm:$0xf]
        %v392 = vld [vmem:[#allocation2 + $0x4] sm:$0xf]
        %v393 = vld [vmem:[#allocation2 + $0x8] sm:$0xf]
        %v394 = vld [vmem:[#allocation2 + $0xc] sm:$0xf]
        %v395 = vld [vmem:[#allocation2 + $0x10] sm:$0xf]
        %v396 = vld [vmem:[#allocation2 + $0x14] sm:$0xf]
        %v397 = vld [vmem:[#allocation2 + $0x18] sm:$0xf]
        %v398 = vld [vmem:[#allocation2 + $0x1c] sm:$0xf]
        %v399 = vld [vmem:[#allocation2 + $0x20] sm:$0xf]
        %v400 = vld [vmem:[#allocation2 + $0x24] sm:$0xf]
        %v401 = vld [vmem:[#allocation2 + $0x28] sm:$0xf]
        %v402 = vld [vmem:[#allocation2 + $0x2c] sm:$0xf]
        %v403 = vld [vmem:[#allocation2 + $0x30] sm:$0xf]
        %v404 = vld [vmem:[#allocation2 + $0x34] sm:$0xf]
        %v405 = vld [vmem:[#allocation2 + $0x38] sm:$0xf]
        %v406 = vld [vmem:[#allocation2 + $0x3c] sm:$0xf]
        %v407 = vld [vmem:[#allocation2 + $0x40] sm:$0xf]
        %v408 = vld [vmem:[#allocation2 + $0x44] sm:$0xf]
        %v409 = vld [vmem:[#allocation2 + $0x48] sm:$0xf]
        %v410 = vld [vmem:[#allocation2 + $0x4c] sm:$0xf]
        %v411 = vld [vmem:[#allocation2 + $0x50] sm:$0xf]
        %v412 = vld [vmem:[#allocation2 + $0x54] sm:$0xf]
        %v413 = vld [vmem:[#allocation2 + $0x58] sm:$0xf]
        %v414 = vld [vmem:[#allocation2 + $0x5c] sm:$0xf]
        %v415 = vld [vmem:[#allocation2 + $0x60] sm:$0xf]
        %v416 = vld [vmem:[#allocation2 + $0x64] sm:$0xf]
        %v417 = vld [vmem:[#allocation2 + $0x68] sm:$0xf]
        %v418 = vld [vmem:[#allocation2 + $0x6c] sm:$0xf]
        %v419 = vld [vmem:[#allocation2 + $0x70] sm:$0xf]
        %v420 = vld [vmem:[#allocation2 + $0x74] sm:$0xf]
        %v421 = vld [vmem:[#allocation2 + $0x78] sm:$0xf]
        %v422 = vld [vmem:[#allocation2 + $0x7c] sm:$0xf]
        %v455 = vunpack.c.l.b16 %v391
        %v456 = vunpack.c.l.b16 %v392
        %v457 = vunpack.c.l.b16 %v393
        %v458 = vunpack.c.l.b16 %v394
        %v459 = vunpack.c.l.b16 %v395
        %v460 = vunpack.c.l.b16 %v396
        %v461 = vunpack.c.l.b16 %v397
        %v462 = vunpack.c.l.b16 %v398
        %v463 = vunpack.c.l.b16 %v399
        %v464 = vunpack.c.l.b16 %v400
        %v465 = vunpack.c.l.b16 %v401
        %v466 = vunpack.c.l.b16 %v402
        %v467 = vunpack.c.l.b16 %v403
        %v468 = vunpack.c.l.b16 %v404
        %v469 = vunpack.c.l.b16 %v405
        %v470 = vunpack.c.l.b16 %v406
        %v471 = vunpack.c.l.b16 %v407
        %v472 = vunpack.c.l.b16 %v408
        %v473 = vunpack.c.l.b16 %v409
        %v474 = vunpack.c.l.b16 %v410
        %v475 = vunpack.c.l.b16 %v411
        %v476 = vunpack.c.l.b16 %v412
        %v477 = vunpack.c.l.b16 %v413
        %v478 = vunpack.c.l.b16 %v414
        %v479 = vunpack.c.l.b16 %v415
        %v480 = vunpack.c.l.b16 %v416
        %v481 = vunpack.c.l.b16 %v417
        %v482 = vunpack.c.l.b16 %v418
        %v483 = vunpack.c.l.b16 %v419
        %v484 = vunpack.c.l.b16 %v420
        %v485 = vunpack.c.l.b16 %v421
        %v486 = vunpack.c.l.b16 %v422
        %v487 = vpack.c.b16 %v456, %v455
        %v488 = vpack.c.b16 %v458, %v457
        %v489 = vpack.c.b16 %v460, %v459
        %v490 = vpack.c.b16 %v462, %v461
        %v491 = vpack.c.b16 %v464, %v463
        %v492 = vpack.c.b16 %v466, %v465
        %v493 = vpack.c.b16 %v468, %v467
        %v494 = vpack.c.b16 %v470, %v469
        %v495 = vpack.c.b16 %v472, %v471
        %v496 = vpack.c.b16 %v474, %v473
        %v497 = vpack.c.b16 %v476, %v475
        %v498 = vpack.c.b16 %v478, %v477
        %v499 = vpack.c.b16 %v480, %v479
        %v500 = vpack.c.b16 %v482, %v481
        %v501 = vpack.c.b16 %v484, %v483
        %v502 = vpack.c.b16 %v486, %v485
        %519 = vmatpush.bf16.msra.mxu0 %v494
        %520 = vmatpush.bf16.msra.mxu0 %v493
        %521 = vmatpush.bf16.msra.mxu0 %v492
        %522 = vmatpush.bf16.msra.mxu0 %v491
        %523 = vmatpush.bf16.msra.mxu0 %v490
        %524 = vmatpush.bf16.msra.mxu0 %v489
        %525 = vmatpush.bf16.msra.mxu0 %v488
        %526 = vmatpush.bf16.msra.mxu0 %v487
        %527 = vmatmul.bf16.gmra.mxu0 %v375
        %v528 = vpop.f32.mrf.mxu0
        %v529 = vadd.f32 0.0, %v528
        %v530 = vpop.f32.mrf.mxu0
        %v531 = vadd.f32 0.0, %v530
        %532 = vmatmul.bf16.gmra.mxu0 %v377
        %v533 = vpop.f32.mrf.mxu0
        %v534 = vadd.f32 0.0, %v533
        %v535 = vpop.f32.mrf.mxu0
        %v536 = vadd.f32 0.0, %v535
        %537 = vmatmul.bf16.gmra.mxu0 %v379
        %v538 = vpop.f32.mrf.mxu0
        %v539 = vadd.f32 0.0, %v538
        %v540 = vpop.f32.mrf.mxu0
        %v541 = vadd.f32 0.0, %v540
        %542 = vmatmul.bf16.gmra.mxu0 %v381
        %v543 = vpop.f32.mrf.mxu0
        %v544 = vadd.f32 0.0, %v543
        %v545 = vpop.f32.mrf.mxu0
        %v546 = vadd.f32 0.0, %v545
        %547 = vmatmul.bf16.gmra.mxu0 %v383
        %v548 = vpop.f32.mrf.mxu0
        %v549 = vadd.f32 0.0, %v548
        %v550 = vpop.f32.mrf.mxu0
        %v551 = vadd.f32 0.0, %v550
        %552 = vmatmul.bf16.gmra.mxu0 %v385
        %v553 = vpop.f32.mrf.mxu0
        %v554 = vadd.f32 0.0, %v553
        %v555 = vpop.f32.mrf.mxu0
        %v556 = vadd.f32 0.0, %v555
        %557 = vmatmul.bf16.gmra.mxu0 %v387
        %v558 = vpop.f32.mrf.mxu0
        %v559 = vadd.f32 0.0, %v558
        %v560 = vpop.f32.mrf.mxu0
        %v561 = vadd.f32 0.0, %v560
        %562 = vmatmul.bf16.gmra.mxu0 %v389
        %v563 = vpop.f32.mrf.mxu0
        %v564 = vadd.f32 0.0, %v563
        %v565 = vpop.f32.mrf.mxu0
        %v566 = vadd.f32 0.0, %v565
        %567 = vdwg.mxu0
        %568 = vmatpush.bf16.msra.mxu0 %v502
        %569 = vmatpush.bf16.msra.mxu0 %v501
        %570 = vmatpush.bf16.msra.mxu0 %v500
        %571 = vmatpush.bf16.msra.mxu0 %v499
        %572 = vmatpush.bf16.msra.mxu0 %v498
        %573 = vmatpush.bf16.msra.mxu0 %v497
        %574 = vmatpush.bf16.msra.mxu0 %v496
        %575 = vmatpush.bf16.msra.mxu0 %v495
        %576 = vmatmul.bf16.gmra.mxu0 %v376
        %v577 = vpop.f32.mrf.mxu0
        %v578 = vadd.f32 %v529, %v577
        %v579 = vpop.f32.mrf.mxu0
        %v580 = vadd.f32 %v531, %v579
        %581 = vmatmul.bf16.gmra.mxu0 %v378
        %v582 = vpop.f32.mrf.mxu0
        %v583 = vadd.f32 %v534, %v582
        %v584 = vpop.f32.mrf.mxu0
        %v585 = vadd.f32 %v536, %v584
        %586 = vmatmul.bf16.gmra.mxu0 %v380
        %v587 = vpop.f32.mrf.mxu0
        %v588 = vadd.f32 %v539, %v587
        %v589 = vpop.f32.mrf.mxu0
        %v590 = vadd.f32 %v541, %v589
        %591 = vmatmul.bf16.gmra.mxu0 %v382
        %v592 = vpop.f32.mrf.mxu0
        %v593 = vadd.f32 %v544, %v592
        %v594 = vpop.f32.mrf.mxu0
        %v595 = vadd.f32 %v546, %v594
        %596 = vmatmul.bf16.gmra.mxu0 %v384
        %v597 = vpop.f32.mrf.mxu0
        %v598 = vadd.f32 %v549, %v597
        %v599 = vpop.f32.mrf.mxu0
        %v600 = vadd.f32 %v551, %v599
        %601 = vmatmul.bf16.gmra.mxu0 %v386
        %v602 = vpop.f32.mrf.mxu0
        %v603 = vadd.f32 %v554, %v602
        %v604 = vpop.f32.mrf.mxu0
        %v605 = vadd.f32 %v556, %v604
        %606 = vmatmul.bf16.gmra.mxu0 %v388
        %v607 = vpop.f32.mrf.mxu0
        %v608 = vadd.f32 %v559, %v607
        %v609 = vpop.f32.mrf.mxu0
        %v610 = vadd.f32 %v561, %v609
        %611 = vmatmul.bf16.gmra.mxu0 %v390
        %v612 = vpop.f32.mrf.mxu0
        %v613 = vadd.f32 %v564, %v612
        %v614 = vpop.f32.mrf.mxu0
        %v615 = vadd.f32 %v566, %v614
        %616 = vdwg.mxu0
        %v617 = vmul.f32 %v578, %v578
        %v618 = vmul.f32 %v580, %v580
        %v619 = vmul.f32 %v583, %v583
        %v620 = vmul.f32 %v585, %v585
        %v621 = vmul.f32 %v588, %v588
        %v622 = vmul.f32 %v590, %v590
        %v623 = vmul.f32 %v593, %v593
        %v624 = vmul.f32 %v595, %v595
        %v625 = vmul.f32 %v598, %v598
        %v626 = vmul.f32 %v600, %v600
        %v627 = vmul.f32 %v603, %v603
        %v628 = vmul.f32 %v605, %v605
        %v629 = vmul.f32 %v608, %v608
        %v630 = vmul.f32 %v610, %v610
        %v631 = vmul.f32 %v613, %v613
        %v632 = vmul.f32 %v615, %v615
        %633 = vadd.xlane.f32.xlu0 %v617
        %v634 = vpop.xlane.xlu0 %633
        %635 = vadd.xlane.f32.xlu0 %v618
        %v636 = vpop.xlane.xlu0 %635
        %637 = vadd.xlane.f32.xlu0 %v619
        %v638 = vpop.xlane.xlu0 %637
        %639 = vadd.xlane.f32.xlu0 %v620
        %v640 = vpop.xlane.xlu0 %639
        %641 = vadd.xlane.f32.xlu0 %v621
        %v642 = vpop.xlane.xlu0 %641
        %643 = vadd.xlane.f32.xlu0 %v622
        %v644 = vpop.xlane.xlu0 %643
        %645 = vadd.xlane.f32.xlu0 %v623
        %v646 = vpop.xlane.xlu0 %645
        %647 = vadd.xlane.f32.xlu0 %v624
        %v648 = vpop.xlane.xlu0 %647
        %649 = vadd.xlane.f32.xlu0 %v625
        %v650 = vpop.xlane.xlu0 %649
        %651 = vadd.xlane.f32.xlu0 %v626
        %v652 = vpop.xlane.xlu0 %651
        %653 = vadd.xlane.f32.xlu0 %v627
        %v654 = vpop.xlane.xlu0 %653
        %655 = vadd.xlane.f32.xlu0 %v628
        %v656 = vpop.xlane.xlu0 %655
        %657 = vadd.xlane.f32.xlu0 %v629
        %v658 = vpop.xlane.xlu0 %657
        %659 = vadd.xlane.f32.xlu0 %v630
        %v660 = vpop.xlane.xlu0 %659
        %661 = vadd.xlane.f32.xlu0 %v631
        %v662 = vpop.xlane.xlu0 %661
        %663 = vadd.xlane.f32.xlu0 %v632
        %v664 = vpop.xlane.xlu0 %663
        %v665 = vmax.f32 %v634, 1e-24
        %v666 = vmax.f32 %v636, 1e-24
        %v667 = vmax.f32 %v638, 1e-24
        %v668 = vmax.f32 %v640, 1e-24
        %v669 = vmax.f32 %v642, 1e-24
        %v670 = vmax.f32 %v644, 1e-24
        %v671 = vmax.f32 %v646, 1e-24
        %v672 = vmax.f32 %v648, 1e-24
        %v673 = vmax.f32 %v650, 1e-24
        %v674 = vmax.f32 %v652, 1e-24
        %v675 = vmax.f32 %v654, 1e-24
        %v676 = vmax.f32 %v656, 1e-24
        %v677 = vmax.f32 %v658, 1e-24
        %v678 = vmax.f32 %v660, 1e-24
        %v679 = vmax.f32 %v662, 1e-24
        %v680 = vmax.f32 %v664, 1e-24
        %v681 = vrsqrt.pop %v665
        %v682 = vmul.f32 %v681, %v665
        %v683 = vmul.f32 %v682, %v681
        %v684 = vmul.f32 0.5, %v683
        %v685 = vsub.f32 1.5, %v684
        %v686 = vmul.f32 %v681, %v685
        %vm687 = vweird.f32 %v665
        %vm688 = vweird.f32 %v681
        %vm689 = vmor %vm687, %vm688
        %v690 = vsel %vm689, %v681, %v686
        %v691 = vrsqrt.pop %v666
        %v692 = vmul.f32 %v691, %v666
        %v693 = vmul.f32 %v692, %v691
        %v694 = vmul.f32 0.5, %v693
        %v695 = vsub.f32 1.5, %v694
        %v696 = vmul.f32 %v691, %v695
        %vm697 = vweird.f32 %v666
        %vm698 = vweird.f32 %v691
        %vm699 = vmor %vm697, %vm698
        %v700 = vsel %vm699, %v691, %v696
        %v701 = vrsqrt.pop %v667
        %v702 = vmul.f32 %v701, %v667
        %v703 = vmul.f32 %v702, %v701
        %v704 = vmul.f32 0.5, %v703
        %v705 = vsub.f32 1.5, %v704
        %v706 = vmul.f32 %v701, %v705
        %vm707 = vweird.f32 %v667
        %vm708 = vweird.f32 %v701
        %vm709 = vmor %vm707, %vm708
        %v710 = vsel %vm709, %v701, %v706
        %v711 = vrsqrt.pop %v668
        %v712 = vmul.f32 %v711, %v668
        %v713 = vmul.f32 %v712, %v711
        %v714 = vmul.f32 0.5, %v713
        %v715 = vsub.f32 1.5, %v714
        %v716 = vmul.f32 %v711, %v715
        %vm717 = vweird.f32 %v668
        %vm718 = vweird.f32 %v711
        %vm719 = vmor %vm717, %vm718
        %v720 = vsel %vm719, %v711, %v716
        %v721 = vrsqrt.pop %v669
        %v722 = vmul.f32 %v721, %v669
        %v723 = vmul.f32 %v722, %v721
        %v724 = vmul.f32 0.5, %v723
        %v725 = vsub.f32 1.5, %v724
        %v726 = vmul.f32 %v721, %v725
        %vm727 = vweird.f32 %v669
        %vm728 = vweird.f32 %v721
        %vm729 = vmor %vm727, %vm728
        %v730 = vsel %vm729, %v721, %v726
        %v731 = vrsqrt.pop %v670
        %v732 = vmul.f32 %v731, %v670
        %v733 = vmul.f32 %v732, %v731
        %v734 = vmul.f32 0.5, %v733
        %v735 = vsub.f32 1.5, %v734
        %v736 = vmul.f32 %v731, %v735
        %vm737 = vweird.f32 %v670
        %vm738 = vweird.f32 %v731
        %vm739 = vmor %vm737, %vm738
        %v740 = vsel %vm739, %v731, %v736
        %v741 = vrsqrt.pop %v671
        %v742 = vmul.f32 %v741, %v671
        %v743 = vmul.f32 %v742, %v741
        %v744 = vmul.f32 0.5, %v743
        %v745 = vsub.f32 1.5, %v744
        %v746 = vmul.f32 %v741, %v745
        %vm747 = vweird.f32 %v671
        %vm748 = vweird.f32 %v741
        %vm749 = vmor %vm747, %vm748
        %v750 = vsel %vm749, %v741, %v746
        %v751 = vrsqrt.pop %v672
        %v752 = vmul.f32 %v751, %v672
        %v753 = vmul.f32 %v752, %v751
        %v754 = vmul.f32 0.5, %v753
        %v755 = vsub.f32 1.5, %v754
        %v756 = vmul.f32 %v751, %v755
        %vm757 = vweird.f32 %v672
        %vm758 = vweird.f32 %v751
        %vm759 = vmor %vm757, %vm758
        %v760 = vsel %vm759, %v751, %v756
        %v761 = vrsqrt.pop %v673
        %v762 = vmul.f32 %v761, %v673
        %v763 = vmul.f32 %v762, %v761
        %v764 = vmul.f32 0.5, %v763
        %v765 = vsub.f32 1.5, %v764
        %v766 = vmul.f32 %v761, %v765
        %vm767 = vweird.f32 %v673
        %vm768 = vweird.f32 %v761
        %vm769 = vmor %vm767, %vm768
        %v770 = vsel %vm769, %v761, %v766
        %v771 = vrsqrt.pop %v674
        %v772 = vmul.f32 %v771, %v674
        %v773 = vmul.f32 %v772, %v771
        %v774 = vmul.f32 0.5, %v773
        %v775 = vsub.f32 1.5, %v774
        %v776 = vmul.f32 %v771, %v775
        %vm777 = vweird.f32 %v674
        %vm778 = vweird.f32 %v771
        %vm779 = vmor %vm777, %vm778
        %v780 = vsel %vm779, %v771, %v776
        %v781 = vrsqrt.pop %v675
        %v782 = vmul.f32 %v781, %v675
        %v783 = vmul.f32 %v782, %v781
        %v784 = vmul.f32 0.5, %v783
        %v785 = vsub.f32 1.5, %v784
        %v786 = vmul.f32 %v781, %v785
        %vm787 = vweird.f32 %v675
        %vm788 = vweird.f32 %v781
        %vm789 = vmor %vm787, %vm788
        %v790 = vsel %vm789, %v781, %v786
        %v791 = vrsqrt.pop %v676
        %v792 = vmul.f32 %v791, %v676
        %v793 = vmul.f32 %v792, %v791
        %v794 = vmul.f32 0.5, %v793
        %v795 = vsub.f32 1.5, %v794
        %v796 = vmul.f32 %v791, %v795
        %vm797 = vweird.f32 %v676
        %vm798 = vweird.f32 %v791
        %vm799 = vmor %vm797, %vm798
        %v800 = vsel %vm799, %v791, %v796
        %v801 = vrsqrt.pop %v677
        %v802 = vmul.f32 %v801, %v677
        %v803 = vmul.f32 %v802, %v801
        %v804 = vmul.f32 0.5, %v803
        %v805 = vsub.f32 1.5, %v804
        %v806 = vmul.f32 %v801, %v805
        %vm807 = vweird.f32 %v677
        %vm808 = vweird.f32 %v801
        %vm809 = vmor %vm807, %vm808
        %v810 = vsel %vm809, %v801, %v806
        %v811 = vrsqrt.pop %v678
        %v812 = vmul.f32 %v811, %v678
        %v813 = vmul.f32 %v812, %v811
        %v814 = vmul.f32 0.5, %v813
        %v815 = vsub.f32 1.5, %v814
        %v816 = vmul.f32 %v811, %v815
        %vm817 = vweird.f32 %v678
        %vm818 = vweird.f32 %v811
        %vm819 = vmor %vm817, %vm818
        %v820 = vsel %vm819, %v811, %v816
        %v821 = vrsqrt.pop %v679
        %v822 = vmul.f32 %v821, %v679
        %v823 = vmul.f32 %v822, %v821
        %v824 = vmul.f32 0.5, %v823
        %v825 = vsub.f32 1.5, %v824
        %v826 = vmul.f32 %v821, %v825
        %vm827 = vweird.f32 %v679
        %vm828 = vweird.f32 %v821
        %vm829 = vmor %vm827, %vm828
        %v830 = vsel %vm829, %v821, %v826
        %v831 = vrsqrt.pop %v680
        %v832 = vmul.f32 %v831, %v680
        %v833 = vmul.f32 %v832, %v831
        %v834 = vmul.f32 0.5, %v833
        %v835 = vsub.f32 1.5, %v834
        %v836 = vmul.f32 %v831, %v835
        %vm837 = vweird.f32 %v680
        %vm838 = vweird.f32 %v831
        %vm839 = vmor %vm837, %vm838
        %v840 = vsel %vm839, %v831, %v836
        %v841 = vmul.f32 %v578, %v690
        %v842 = vmul.f32 %v580, %v700
        %v843 = vmul.f32 %v583, %v710
        %v844 = vmul.f32 %v585, %v720
        %v845 = vmul.f32 %v588, %v730
        %v846 = vmul.f32 %v590, %v740
        %v847 = vmul.f32 %v593, %v750
        %v848 = vmul.f32 %v595, %v760
        %v849 = vmul.f32 %v598, %v770
        %v850 = vmul.f32 %v600, %v780
        %v851 = vmul.f32 %v603, %v790
        %v852 = vmul.f32 %v605, %v800
        %v853 = vmul.f32 %v608, %v810
        %v854 = vmul.f32 %v610, %v820
        %v855 = vmul.f32 %v613, %v830
        %v856 = vmul.f32 %v615, %v840
        %857 = vst [vmem:[%s210] sm:$0xff] %v841
        %858 = vst [vmem:[%s210 + $0x8] sm:$0xff] %v842
        %859 = vst [vmem:[%s210 + $0x10] sm:$0xff] %v843
        %860 = vst [vmem:[%s210 + $0x18] sm:$0xff] %v844
        %861 = vst [vmem:[%s210 + $0x20] sm:$0xff] %v845
        %862 = vst [vmem:[%s210 + $0x28] sm:$0xff] %v846
        %863 = vst [vmem:[%s210 + $0x30] sm:$0xff] %v847
        %864 = vst [vmem:[%s210 + $0x38] sm:$0xff] %v848
        %865 = vst [vmem:[%s210 + $0x40] sm:$0xff] %v849
        %866 = vst [vmem:[%s210 + $0x48] sm:$0xff] %v850
        %867 = vst [vmem:[%s210 + $0x50] sm:$0xff] %v851
        %868 = vst [vmem:[%s210 + $0x58] sm:$0xff] %v852
        %869 = vst [vmem:[%s210 + $0x60] sm:$0xff] %v853
        %870 = vst [vmem:[%s210 + $0x68] sm:$0xff] %v854
        %871 = vst [vmem:[%s210 + $0x70] sm:$0xff] %v855
        %872 = vst [vmem:[%s210 + $0x78] sm:$0xff] %v856
        %s873 = sand.u32 %s116, 1
        %s874 = scalar_lea.sflag [#allocation4], %s873
        %s875 = sand.u32 %s116, 1
        %s876 = smul.addr %s875, 128
        %s877 = scalar_lea.vmem [#allocation5], %s876
        // Predicated region
        $region41: #{projection_forward.3} parent=35 // pred_check
          %p878 = pneg %p126
        $region42: #{projection_forward.3} parent=35 // pred_check_branch
          %880 = sbr.rel (%p878) target = $region44
        $region43: #{projection_forward.3} parent=35 // pred_region
          %s881 = smul.u32 16, %s19
          %883 = vsyncadd %s874, 0
          %s884 = smul.addr %s881, 8
          %s885 = scalar_lea.hbm %s4, %s884
          %s886 = sshll.u32 %s877, 4
          %s887 = int_to_ptr.vmem [resolvable:$true] %s886
          %s888 = sshll.u32 %s885, 4
          %s889 = int_to_ptr.hbm [resolvable:$true] %s888
          %894 = dma.vmem_to_hbm [thread:$0]  %s887, 2048, %s889, %s874, 128, 128, 8
        $region44: #{projection_forward.3} parent=35 // pred_fallthru
          _
      $region36: #{projection_forward.3} parent=5 // pred_fallthru
        _
      %p895 = scmp.le.s32.totalorder 2, %s14
      // Predicated region
      $region45: #{projection_forward.3} parent=5 // pred_check
        %p896 = pneg %p895
      $region46: #{projection_forward.3} parent=5 // pred_check_branch
        %898 = sbr.rel (%p896) target = $region48
      $region47: #{projection_forward.3} parent=5 // pred_region
        %s899 = ssub.s32 %s14, 2
        // Predicated region
        $region49: #{projection_forward.3} parent=47 // pred_check
          %p900 = pneg %p132
        $region50: #{projection_forward.3} parent=47 // pred_check_branch
          %902 = sbr.rel (%p900) target = $region52
        $region51: #{projection_forward.3} parent=47 // pred_region
          %s903 = sand.u32 %s117, 1
          %s904 = scalar_lea.sflag [#allocation4], %s903
          %s905 = sand.u32 %s117, 1
          %s906 = smul.addr %s905, 128
          %s907 = scalar_lea.vmem [#allocation5], %s906
          %909 = dma.done %s904, 2048
        $region52: #{projection_forward.3} parent=47 // pred_fallthru
          _
      $region48: #{projection_forward.3} parent=5 // pred_fallthru
        _
    $region6: #{projection_forward.3} parent=1 // loop_footer
      %s18 = sadd.s32 1, %s14
    $region7: #{projection_forward.3} parent=1 // loop_footer_branch
      %13 = sbr.rel target = $region3
    $region8: #{projection_forward.3} parent=1 // loop_exit
      _
    %910 = vsyncpa [#allocation3], 1
    %s911 = scalar_lea.sflag [#allocation3], 1
    %912 = vsyncpa %s911, 1
    %913 = vsyncpa [#allocation4], 1
    %s914 = scalar_lea.sflag [#allocation4], 1
    %915 = vsyncpa %s914, 1

</llo_original>
